<compile_context>
chip_gen: v7x
topology: tpu7x:2x2x1
jax: 0.10.0
libtpu: 0.0.40
codegen_flags: <defaults>
</compile_context>

<pallas_src>
import functools

import jax
import jax.numpy as jnp
from jax.experimental import pallas as pl
from jax.experimental.pallas import tpu as pltpu  # noqa: F401  (TPU backend; no tpu-specific params needed at this size)

# Small, T5-flavoured sizes.
B, S, D, H = 2, 8, 32, 4
DH = D // H


def _t5_self_attn_kernel(hs_ref, bias_ref, wqkv_ref, wo_ref, out_ref):
    """Single whole-array invocation: the whole (tiny) problem lives in VMEM.

    hs_ref:   [N, D]         with N = B*S (batch folded onto sublanes)
    bias_ref: [H, N, N]      pos-bias + additive mask + cross-batch block mask
    wqkv_ref: [3, H, D, DH]  stacked per-head Q/K/V projection weights
    wo_ref:   [H, DH, D]     per-head output projection weights
    """
    hs = hs_ref[...]                                    # [N, D]
    bias = bias_ref[...]                                # [H, N, N]
    num_heads, n, _ = bias.shape
    d = hs.shape[-1]

    # Head-major activation view, built once (leading-dim broadcast: no lane movement).
    hs_h = jnp.broadcast_to(hs[None, :, :], (num_heads, n, d))     # [H, N, D]

    # Projections straight into per-head layout (batched over heads on the MXU).
    q = jnp.einsum("hnd,hdf->hnf", hs_h, wqkv_ref[0],
                   preferred_element_type=jnp.float32)             # [H, N, DH]
    k = jnp.einsum("hnd,hdf->hnf", hs_h, wqkv_ref[1],
                   preferred_element_type=jnp.float32)
    v = jnp.einsum("hnd,hdf->hnf", hs_h, wqkv_ref[2],
                   preferred_element_type=jnp.float32)

    # All heads' scores in one batched matmul; `bias` already carries the position
    # bias, the additive attention mask and the -1e9 cross-batch block mask.
    s = jnp.einsum("hqf,hkf->hqk", q, k,
                   preferred_element_type=jnp.float32) + bias      # [H, N, N]

    # Numerically stable softmax over keys; reciprocal goes to the (idle) EUP.
    m = jnp.max(s, axis=-1, keepdims=True)
    p = jnp.exp(s - m)
    p = p * pl.reciprocal(jnp.sum(p, axis=-1, keepdims=True), approx=True)

    ctx = jnp.einsum("hqk,hkf->hqf", p, v,
                     preferred_element_type=jnp.float32)           # [H, N, DH]

    # Output projection as one batched matmul, then a cheap add over the H leading dim.
    proj = jnp.einsum("hnf,hfd->hnd", ctx, wo_ref[...],
                      preferred_element_type=jnp.float32)          # [H, N, D]
    out_ref[...] = (hs + jnp.sum(proj, axis=0)).astype(out_ref.dtype)


def t5_self_attention_pallas(hidden_states, attention_mask, position_bias, params):
    b, s, d = hidden_states.shape
    h = position_bias.shape[1]
    dh = d // h
    n = b * s

    # ---- layout plumbing (plain JAX outside the kernel; fused by XLA) ----
    hs_flat = hidden_states.reshape(n, d)                          # fold (B, S) -> sublanes

    wq_h = params["wq"].reshape(d, h, dh).transpose(1, 0, 2)       # [H, D, DH]
    wk_h = params["wk"].reshape(d, h, dh).transpose(1, 0, 2)
    wv_h = params["wv"].reshape(d, h, dh).transpose(1, 0, 2)
    wqkv = jnp.stack([wq_h, wk_h, wv_h], axis=0)                   # [3, H, D, DH]
    wo_h = params["wo"].reshape(h, dh, d)                          # [H, DH, D]

    # Fold position bias + additive mask + cross-batch block mask into [H, N, N].
    pb = position_bias[0]                                          # [H, S, S]
    am = attention_mask[:, 0, 0, :]                                # [B, S] additive
    same = jnp.eye(b, dtype=bool)                                  # [Bq, Bk]
    bias5 = pb[:, None, :, None, :] + am[None, None, None, :, :]   # [H, 1, Sq, Bk, Sk]
    bias5 = jnp.where(same[None, :, None, :, None], bias5, -1e9)   # [H, Bq, Sq, Bk, Sk]
    bias = bias5.reshape(h, n, n).astype(jnp.float32)

    # No grid, no BlockSpecs: whole arrays are delivered to VMEM in one shot, which is
    # the minimum-overhead configuration at this problem size.
    out_flat = pl.pallas_call(
        _t5_self_attn_kernel,
        out_shape=jax.ShapeDtypeStruct((n, d), hidden_states.dtype),
    )(hs_flat, bias, wqkv, wo_h)
    return out_flat.reshape(b, s, d)


def checkpoint_wrapper_forward(hidden_states, attention_mask, position_bias, params,
                               use_checkpoint=False, training=False):
    """JAX equivalent of CheckpointWrapper.forward (forward values only)."""
    def module_fwd(hs, mask, bias):
        out_hs = t5_self_attention_pallas(hs, mask, bias, params)
        return (out_hs, bias)  # T5-block-style output tuple

    if use_checkpoint and training:
        # jax.checkpoint == torch.utils.checkpoint for gradient memory; forward values
        # are identical and no None/empty-tensor juggling is needed in JAX.
        module_fwd = jax.checkpoint(module_fwd)
    return module_fwd(hidden_states, attention_mask, position_bias)


def _reference_forward(hs, mask, bias, params):
    """Pure-JAX reference for correctness checking."""
    b, s, d = hs.shape
    h = bias.shape[1]
    dh = d // h
    q = hs @ params["wq"]
    k = hs @ params["wk"]
    v = hs @ params["wv"]
    q = q.reshape(b, s, h, dh).transpose(0, 2, 1, 3)
    k = k.reshape(b, s, h, dh).transpose(0, 2, 1, 3)
    v = v.reshape(b, s, h, dh).transpose(0, 2, 1, 3)
    scores = jnp.einsum("bhqd,bhkd->bhqk", q, k) + bias + mask
    p = jax.nn.softmax(scores, axis=-1)
    ctx = jnp.einsum("bhqk,bhkd->bhqd", p, v)
    ctx = ctx.transpose(0, 2, 1, 3).reshape(b, s, d)
    return hs + ctx @ params["wo"]


if __name__ == "__main__":
    key = jax.random.PRNGKey(0)
    k_hs, k_bias, k_q, k_k, k_v, k_o, _ = jax.random.split(key, 7)

    hidden_states = jax.random.normal(k_hs, (B, S, D), dtype=jnp.float32)

    # Additive attention mask: last two key positions of batch 1 are masked out.
    valid = jnp.ones((B, S), dtype=jnp.float32).at[1, -2:].set(0.0)
    attention_mask = ((1.0 - valid) * -1e9).reshape(B, 1, 1, S)

    position_bias = 0.1 * jax.random.normal(k_bias, (1, H, S, S), dtype=jnp.float32)

    params = {
        "wq": 0.05 * jax.random.normal(k_q, (D, D), dtype=jnp.float32),
        "wk": 0.05 * jax.random.normal(k_k, (D, D), dtype=jnp.float32),
        "wv": 0.05 * jax.random.normal(k_v, (D, D), dtype=jnp.float32),
        "wo": 0.05 * jax.random.normal(k_o, (D, D), dtype=jnp.float32),
    }

    fwd = jax.jit(functools.partial(checkpoint_wrapper_forward,
                                    use_checkpoint=False, training=False))
    out_hs, out_bias = fwd(hidden_states, attention_mask, position_bias, params)
    out_hs = jax.block_until_ready(out_hs)

    ref = _reference_forward(hidden_states, attention_mask, position_bias, params)
    assert out_hs.shape == (B, S, D) and out_bias.shape == (1, H, S, S)
    # Tolerance slightly relaxed vs. exact division because the softmax denominator
    # uses the hardware approximate reciprocal (pl.reciprocal(..., approx=True)).
    assert jnp.allclose(out_hs, ref, atol=2e-3, rtol=2e-3)

    print("KERNEL_OK")
</pallas_src>

<mosaic_0001>
module attributes {stable_mosaic.version = 11 : i64} {
  func.func @_t5_self_attn_kernel(%arg0: memref<16x32xf32, #tpu.memory_space<vmem>>, %arg1: memref<4x16x16xf32, #tpu.memory_space<vmem>>, %arg2: memref<3x4x32x8xf32, #tpu.memory_space<vmem>>, %arg3: memref<4x8x32xf32, #tpu.memory_space<vmem>>, %arg4: memref<16x32xf32, #tpu.memory_space<vmem>>) attributes {dimension_semantics = [], scalar_prefetch = 0 : i64, scratch_operands = 0 : i64, tpu.core_type = #tpu.core_type<tc>} {
    %c0 = arith.constant 0 : index
    %c0_0 = arith.constant 0 : index
    %0 = vector.load %arg0[%c0, %c0_0] : memref<16x32xf32, #tpu.memory_space<vmem>>, vector<16x32xf32>
    %c0_1 = arith.constant 0 : index
    %c0_2 = arith.constant 0 : index
    %c0_3 = arith.constant 0 : index
    %1 = vector.load %arg1[%c0_1, %c0_2, %c0_3] : memref<4x16x16xf32, #tpu.memory_space<vmem>>, vector<4x16x16xf32>
    %2 = vector.shape_cast %0 : vector<16x32xf32> to vector<1x16x32xf32>
    %3 = vector.shape_cast %2 : vector<1x16x32xf32> to vector<1x16x32xf32>
    %4 = vector.broadcast %3 : vector<1x16x32xf32> to vector<4x16x32xf32>
    %c0_4 = arith.constant 0 : index
    %c0_5 = arith.constant 0 : index
    %c0_6 = arith.constant 0 : index
    %c0_7 = arith.constant 0 : index
    %5 = vector.load %arg2[%c0_4, %c0_5, %c0_6, %c0_7] : memref<3x4x32x8xf32, #tpu.memory_space<vmem>>, vector<1x4x32x8xf32>
    %6 = vector.shape_cast %5 : vector<1x4x32x8xf32> to vector<4x32x8xf32>
    "tpu.trace_start"() <{level = 10 : i32, message = "hnd,hdf->hnf"}> : () -> ()
    %cst = arith.constant dense<0.000000e+00> : vector<4x16x8xf32>
    %7 = tpu.matmul %4, %6, %cst {dimension_numbers = #tpu.dot_dimension_numbers<[2], [1], [1], [2], [0, 0, 0, 1, 1, 2], [0], [0]>} : vector<4x16x32xf32>, vector<4x32x8xf32>, vector<4x16x8xf32> -> vector<4x16x8xf32>
    "tpu.trace_stop"() : () -> ()
    %c1 = arith.constant 1 : index
    %c0_8 = arith.constant 0 : index
    %c0_9 = arith.constant 0 : index
    %c0_10 = arith.constant 0 : index
    %8 = vector.load %arg2[%c1, %c0_8, %c0_9, %c0_10] : memref<3x4x32x8xf32, #tpu.memory_space<vmem>>, vector<1x4x32x8xf32>
    %9 = vector.shape_cast %8 : vector<1x4x32x8xf32> to vector<4x32x8xf32>
    "tpu.trace_start"() <{level = 10 : i32, message = "hnd,hdf->hnf"}> : () -> ()
    %cst_11 = arith.constant dense<0.000000e+00> : vector<4x16x8xf32>
    %10 = tpu.matmul %4, %9, %cst_11 {dimension_numbers = #tpu.dot_dimension_numbers<[2], [1], [1], [2], [0, 0, 0, 1, 1, 2], [0], [0]>} : vector<4x16x32xf32>, vector<4x32x8xf32>, vector<4x16x8xf32> -> vector<4x16x8xf32>
    "tpu.trace_stop"() : () -> ()
    %c2 = arith.constant 2 : index
    %c0_12 = arith.constant 0 : index
    %c0_13 = arith.constant 0 : index
    %c0_14 = arith.constant 0 : index
    %11 = vector.load %arg2[%c2, %c0_12, %c0_13, %c0_14] : memref<3x4x32x8xf32, #tpu.memory_space<vmem>>, vector<1x4x32x8xf32>
    %12 = vector.shape_cast %11 : vector<1x4x32x8xf32> to vector<4x32x8xf32>
    "tpu.trace_start"() <{level = 10 : i32, message = "hnd,hdf->hnf"}> : () -> ()
    %cst_15 = arith.constant dense<0.000000e+00> : vector<4x16x8xf32>
    %13 = tpu.matmul %4, %12, %cst_15 {dimension_numbers = #tpu.dot_dimension_numbers<[2], [1], [1], [2], [0, 0, 0, 1, 1, 2], [0], [0]>} : vector<4x16x32xf32>, vector<4x32x8xf32>, vector<4x16x8xf32> -> vector<4x16x8xf32>
    "tpu.trace_stop"() : () -> ()
    "tpu.trace_start"() <{level = 10 : i32, message = "hqf,hkf->hqk"}> : () -> ()
    %cst_16 = arith.constant dense<0.000000e+00> : vector<4x16x16xf32>
    %14 = tpu.matmul %7, %10, %cst_16 {dimension_numbers = #tpu.dot_dimension_numbers<[2], [2], [1], [1], [0, 0, 0, 1, 1, 1], [0], [0]>} : vector<4x16x8xf32>, vector<4x16x8xf32>, vector<4x16x16xf32> -> vector<4x16x16xf32>
    "tpu.trace_stop"() : () -> ()
    %15 = arith.addf %14, %1 : vector<4x16x16xf32>
    %cst_17 = arith.constant dense<0xFF800000> : vector<4x16xf32>
    %16 = vector.multi_reduction <maximumf>, %15, %cst_17 [2] : vector<4x16x16xf32> to vector<4x16xf32>
    %17 = vector.shape_cast %16 : vector<4x16xf32> to vector<4x16x1xf32>
    %18 = vector.broadcast %17 : vector<4x16x1xf32> to vector<4x16x16xf32>
    %19 = arith.subf %15, %18 : vector<4x16x16xf32>
    %20 = math.exp %19 : vector<4x16x16xf32>
    %cst_18 = arith.constant dense<0.000000e+00> : vector<4x16xf32>
    %21 = vector.multi_reduction <add>, %20, %cst_18 [2] : vector<4x16x16xf32> to vector<4x16xf32>
    %22 = vector.shape_cast %21 : vector<4x16xf32> to vector<4x16x1xf32>
    %23 = tpu.reciprocal %22 {approx = true} : vector<4x16x1xf32> -> vector<4x16x1xf32>
    %24 = vector.broadcast %23 : vector<4x16x1xf32> to vector<4x16x16xf32>
    %25 = arith.mulf %20, %24 : vector<4x16x16xf32>
    "tpu.trace_start"() <{level = 10 : i32, message = "hqk,hkf->hqf"}> : () -> ()
    %cst_19 = arith.constant dense<0.000000e+00> : vector<4x16x8xf32>
    %26 = tpu.matmul %25, %13, %cst_19 {dimension_numbers = #tpu.dot_dimension_numbers<[2], [1], [1], [2], [0, 0, 0, 1, 1, 2], [0], [0]>} : vector<4x16x16xf32>, vector<4x16x8xf32>, vector<4x16x8xf32> -> vector<4x16x8xf32>
    "tpu.trace_stop"() : () -> ()
    %c0_20 = arith.constant 0 : index
    %c0_21 = arith.constant 0 : index
    %c0_22 = arith.constant 0 : index
    %27 = vector.load %arg3[%c0_20, %c0_21, %c0_22] : memref<4x8x32xf32, #tpu.memory_space<vmem>>, vector<4x8x32xf32>
    "tpu.trace_start"() <{level = 10 : i32, message = "hnf,hfd->hnd"}> : () -> ()
    %cst_23 = arith.constant dense<0.000000e+00> : vector<4x16x32xf32>
    %28 = tpu.matmul %26, %27, %cst_23 {dimension_numbers = #tpu.dot_dimension_numbers<[2], [1], [1], [2], [0, 0, 0, 1, 1, 2], [0], [0]>} : vector<4x16x8xf32>, vector<4x8x32xf32>, vector<4x16x32xf32> -> vector<4x16x32xf32>
    "tpu.trace_stop"() : () -> ()
    %cst_24 = arith.constant dense<0.000000e+00> : vector<16x32xf32>
    %29 = vector.multi_reduction <add>, %28, %cst_24 [0] : vector<4x16x32xf32> to vector<16x32xf32>
    %30 = arith.addf %0, %29 : vector<16x32xf32>
    %c0_25 = arith.constant 0 : index
    %c0_26 = arith.constant 0 : index
    %31 = vector.load %arg4[%c0_25, %c0_26] : memref<16x32xf32, #tpu.memory_space<vmem>>, vector<16x32xf32>
    tpu.vector_store %arg4[%c0_25, %c0_26], %30 {strides = array<i32>} : memref<16x32xf32, #tpu.memory_space<vmem>>, vector<16x32xf32>,
    return
  }
}

</mosaic_0001>

<llo_original>
// kernel: checkpoint_wrapper_forward.1
$region0: #{checkpoint_wrapper_forward.1}
  #allocation0 [shape = 'u32[]', space=smem, size = 0x4, offset = 0x4, fixed_abs, tag = 'smem constant byte address 0x4 - core index']
  #allocation1 [shape = 'u32[144,128]{1,0:T(1,128)}', space=vmem, size = 0x12000, scoped, tag = 'internal scratch']
  %s0 = inlined_call_operand.vmem [shape: f32[16,32], index: 0, kind: input, shape index: {}]
  %s1 = inlined_call_operand.vmem [shape: f32[4,16,16], index: 1, kind: input, shape index: {}]
  %s2 = inlined_call_operand.vmem [shape: f32[3,4,32,8], index: 2, kind: input, shape index: {}]
  %s3 = inlined_call_operand.vmem [shape: f32[4,8,32], index: 3, kind: input, shape index: {}]
  %s4 = inlined_call_operand.hbm [shape: f32[16,32], index: 4, kind: output, shape index: {}]
  %s5 = sld [smem:[#allocation0]]
  $region26: #{checkpoint_wrapper_forward.1} parent=0
    _
  %s7 = ssub.s32 1, %s5
  %s8 = scalar_select 0, %s7, %s5
  $region1: #{checkpoint_wrapper_forward.1} parent=0
    #allocation2 [shape = 'u8[8192]{0}', space=vmem, size = 0x2000, scoped, tag = 'output window, operand 0, single buffered']
    #allocation3 [shape = 's32[1]{0}', space=sflag, size = 0x4, scoped, tag = 'scoped memory for checkpoint_wrapper_forward.1']
    %9 = vsyncpa [#allocation3], 0
    // Predicated region
    $region2: #{checkpoint_wrapper_forward.1} parent=1 // pred_check
      _
    $region3: #{checkpoint_wrapper_forward.1} parent=1 // pred_check_branch
      %11 = sbr.rel (0) target = $region5
    $region4: #{checkpoint_wrapper_forward.1} parent=1 // pred_region
      _
    $region5: #{checkpoint_wrapper_forward.1} parent=1 // pred_fallthru
      _
    // Predicated region
    $region6: #{checkpoint_wrapper_forward.1} parent=1 // pred_check
      _
    $region7: #{checkpoint_wrapper_forward.1} parent=1 // pred_check_branch
      %13 = sbr.rel (0) target = $region9
    $region8: #{checkpoint_wrapper_forward.1} parent=1 // pred_region
      _
    $region9: #{checkpoint_wrapper_forward.1} parent=1 // pred_fallthru
      _
    // Predicated region
    $region10: #{checkpoint_wrapper_forward.1} parent=1 // pred_check
      _
    $region11: #{checkpoint_wrapper_forward.1} parent=1 // pred_check_branch
      %15 = sbr.rel (0) target = $region13
    $region12: #{checkpoint_wrapper_forward.1} parent=1 // pred_region
      _
    $region13: #{checkpoint_wrapper_forward.1} parent=1 // pred_fallthru
      _
    // Predicated region
    $region14: #{checkpoint_wrapper_forward.1} parent=1 // pred_check
      _
    $region15: #{checkpoint_wrapper_forward.1} parent=1 // pred_check_branch
      %17 = sbr.rel (0) target = $region17
    $region16: #{checkpoint_wrapper_forward.1} parent=1 // pred_region
      _
    $region17: #{checkpoint_wrapper_forward.1} parent=1 // pred_fallthru
      _
    %v18 = vld [vmem:[%s0] sm:$0xff]
    %v19 = vld [vmem:[%s0 + $0x8] sm:$0xff]
    %v20 = vld [vmem:[%s1] sm:$0xff]
    %v21 = vld [vmem:[%s1 + $0x8] sm:$0xff]
    %v22 = vld [vmem:[%s1 + $0x10] sm:$0xff]
    %v23 = vld [vmem:[%s1 + $0x18] sm:$0xff]
    %v24 = vld [vmem:[%s1 + $0x20] sm:$0xff]
    %v25 = vld [vmem:[%s1 + $0x28] sm:$0xff]
    %v26 = vld [vmem:[%s1 + $0x30] sm:$0xff]
    %v27 = vld [vmem:[%s1 + $0x38] sm:$0xff]
    %v28 = vld [vmem:[%s2] sm:$0xff]
    %v29 = vld [vmem:[%s2 + $0x8] sm:$0xff]
    %v30 = vld [vmem:[%s2 + $0x10] sm:$0xff]
    %v31 = vld [vmem:[%s2 + $0x18] sm:$0xff]
    %v32 = vld [vmem:[%s2 + $0x20] sm:$0xff]
    %v33 = vld [vmem:[%s2 + $0x28] sm:$0xff]
    %v34 = vld [vmem:[%s2 + $0x30] sm:$0xff]
    %v35 = vld [vmem:[%s2 + $0x38] sm:$0xff]
    %v36 = vld [vmem:[%s2 + $0x40] sm:$0xff]
    %v37 = vld [vmem:[%s2 + $0x48] sm:$0xff]
    %v38 = vld [vmem:[%s2 + $0x50] sm:$0xff]
    %v39 = vld [vmem:[%s2 + $0x58] sm:$0xff]
    %v40 = vld [vmem:[%s2 + $0x60] sm:$0xff]
    %v41 = vld [vmem:[%s2 + $0x68] sm:$0xff]
    %v42 = vld [vmem:[%s2 + $0x70] sm:$0xff]
    %v43 = vld [vmem:[%s2 + $0x78] sm:$0xff]
    %vm44 = vcmask 261120
    %v46 = vsel %vm44, %v18, 0
    %v49 = vsel %vm44, %v19, 0
    %51 = vmatprep.subr.mxu0 0.0
    %52 = vmatpush1.msra.mxu0 %v28
    %53 = vmatprep.subr.mxu0 0.0
    %54 = vmatpush1.msra.mxu0 %v29
    %55 = vmatprep.subr.mxu0 0.0
    %56 = vmatpush1.msra.mxu0 %v30
    %57 = vmatprep.subr.mxu0 0.0
    %58 = vmatpush1.msra.mxu0 %v31
    %59 = vmatprep.subr.mxu0 0.0
    %60 = vmatpush1.msra.mxu0 0.0
    %61 = vmatprep.subr.mxu0 0.0
    %62 = vmatpush1.msra.mxu0 0.0
    %63 = vmatprep.subr.mxu0 0.0
    %64 = vmatpush1.msra.mxu0 0.0
    %65 = vmatprep.subr.mxu0 0.0
    %66 = vmatpush1.msra.mxu0 0.0
    %67 = vmatprep.subr.mxu0 0.0
    %68 = vmatpush1.msra.mxu0 0.0
    %69 = vmatprep.subr.mxu0 0.0
    %70 = vmatpush1.msra.mxu0 0.0
    %71 = vmatprep.subr.mxu0 0.0
    %72 = vmatpush1.msra.mxu0 0.0
    %73 = vmatprep.subr.mxu0 0.0
    %74 = vmatpush1.msra.mxu0 0.0
    %75 = vmatprep.subr.mxu0 0.0
    %76 = vmatpush1.msra.mxu0 0.0
    %77 = vmatprep.subr.mxu0 0.0
    %78 = vmatpush1.msra.mxu0 0.0
    %79 = vmatprep.subr.mxu0 0.0
    %80 = vmatpush1.msra.mxu0 0.0
    %81 = vmatprep.subr.mxu0 0.0
    %82 = vmatpush1.msra.mxu0 0.0
    %83 = vmatprep.subr.mxu0 0.0
    %84 = vmatpush1.msra.mxu0 0.0
    %85 = vmatprep.subr.mxu0 0.0
    %86 = vmatpush1.msra.mxu0 0.0
    %87 = vmatprep.subr.mxu0 0.0
    %88 = vmatpush1.msra.mxu0 0.0
    %89 = vmatprep.subr.mxu0 0.0
    %90 = vmatpush1.msra.mxu0 0.0
    %91 = vmatprep.subr.mxu0 0.0
    %92 = vmatpush1.msra.mxu0 0.0
    %93 = vmatprep.subr.mxu0 0.0
    %94 = vmatpush1.msra.mxu0 0.0
    %95 = vmatprep.subr.mxu0 0.0
    %96 = vmatpush1.msra.mxu0 0.0
    %97 = vmatprep.subr.mxu0 0.0
    %98 = vmatpush1.msra.mxu0 0.0
    %99 = vmatprep.subr.mxu0 0.0
    %100 = vmatpush1.msra.mxu0 0.0
    %101 = vmatprep.subr.mxu0 0.0
    %102 = vmatpush1.msra.mxu0 0.0
    %103 = vmatprep.subr.mxu0 0.0
    %104 = vmatpush1.msra.mxu0 0.0
    %105 = vmatprep.subr.mxu0 0.0
    %106 = vmatpush1.msra.mxu0 0.0
    %107 = vmatprep.subr.mxu0 0.0
    %108 = vmatpush1.msra.mxu0 0.0
    %109 = vmatprep.subr.mxu0 0.0
    %110 = vmatpush1.msra.mxu0 0.0
    %111 = vmatprep.subr.mxu0 0.0
    %112 = vmatpush1.msra.mxu0 0.0
    %113 = vmatprep.subr.mxu0 0.0
    %114 = vmatpush1.msra.mxu0 0.0
    %115 = vmatprep.mubr.f32.mxu0 0.0
    %116 = vmatmul.mubr.f32.gmra.mrb[0].mxu0 %v46
    %v117 = vpop.f32.mrb[0].mxu0
    %v118 = vadd.f32 0.0, %v117
    %v119 = vpop.f32.mrb[0].mxu0
    %120 = vmatprep.mubr.f32.mxu0 0.0
    %121 = vmatmul.mubr.f32.gmra.mrb[0].mxu0 %v49
    %v122 = vpop.f32.mrb[0].mxu0
    %v123 = vadd.f32 0.0, %v122
    %v124 = vpop.f32.mrb[0].mxu0
    %125 = vdwg.mxu0
    %126 = vmatprep.subr.mxu0 0.0
    %127 = vmatpush1.msra.mxu0 %v32
    %128 = vmatprep.subr.mxu0 0.0
    %129 = vmatpush1.msra.mxu0 %v33
    %130 = vmatprep.subr.mxu0 0.0
    %131 = vmatpush1.msra.mxu0 %v34
    %132 = vmatprep.subr.mxu0 0.0
    %133 = vmatpush1.msra.mxu0 %v35
    %134 = vmatprep.subr.mxu0 0.0
    %135 = vmatpush1.msra.mxu0 0.0
    %136 = vmatprep.subr.mxu0 0.0
    %137 = vmatpush1.msra.mxu0 0.0
    %138 = vmatprep.subr.mxu0 0.0
    %139 = vmatpush1.msra.mxu0 0.0
    %140 = vmatprep.subr.mxu0 0.0
    %141 = vmatpush1.msra.mxu0 0.0
    %142 = vmatprep.subr.mxu0 0.0
    %143 = vmatpush1.msra.mxu0 0.0
    %144 = vmatprep.subr.mxu0 0.0
    %145 = vmatpush1.msra.mxu0 0.0
    %146 = vmatprep.subr.mxu0 0.0
    %147 = vmatpush1.msra.mxu0 0.0
    %148 = vmatprep.subr.mxu0 0.0
    %149 = vmatpush1.msra.mxu0 0.0
    %150 = vmatprep.subr.mxu0 0.0
    %151 = vmatpush1.msra.mxu0 0.0
    %152 = vmatprep.subr.mxu0 0.0
    %153 = vmatpush1.msra.mxu0 0.0
    %154 = vmatprep.subr.mxu0 0.0
    %155 = vmatpush1.msra.mxu0 0.0
    %156 = vmatprep.subr.mxu0 0.0
    %157 = vmatpush1.msra.mxu0 0.0
    %158 = vmatprep.subr.mxu0 0.0
    %159 = vmatpush1.msra.mxu0 0.0
    %160 = vmatprep.subr.mxu0 0.0
    %161 = vmatpush1.msra.mxu0 0.0
    %162 = vmatprep.subr.mxu0 0.0
    %163 = vmatpush1.msra.mxu0 0.0
    %164 = vmatprep.subr.mxu0 0.0
    %165 = vmatpush1.msra.mxu0 0.0
    %166 = vmatprep.subr.mxu0 0.0
    %167 = vmatpush1.msra.mxu0 0.0
    %168 = vmatprep.subr.mxu0 0.0
    %169 = vmatpush1.msra.mxu0 0.0
    %170 = vmatprep.subr.mxu0 0.0
    %171 = vmatpush1.msra.mxu0 0.0
    %172 = vmatprep.subr.mxu0 0.0
    %173 = vmatpush1.msra.mxu0 0.0
    %174 = vmatprep.subr.mxu0 0.0
    %175 = vmatpush1.msra.mxu0 0.0
    %176 = vmatprep.subr.mxu0 0.0
    %177 = vmatpush1.msra.mxu0 0.0
    %178 = vmatprep.subr.mxu0 0.0
    %179 = vmatpush1.msra.mxu0 0.0
    %180 = vmatprep.subr.mxu0 0.0
    %181 = vmatpush1.msra.mxu0 0.0
    %182 = vmatprep.subr.mxu0 0.0
    %183 = vmatpush1.msra.mxu0 0.0
    %184 = vmatprep.subr.mxu0 0.0
    %185 = vmatpush1.msra.mxu0 0.0
    %186 = vmatprep.subr.mxu0 0.0
    %187 = vmatpush1.msra.mxu0 0.0
    %188 = vmatprep.subr.mxu0 0.0
    %189 = vmatpush1.msra.mxu0 0.0
    %190 = vmatprep.mubr.f32.mxu0 0.0
    %191 = vmatmul.mubr.f32.gmra.mrb[0].mxu0 %v46
    %v192 = vpop.f32.mrb[0].mxu0
    %v193 = vadd.f32 0.0, %v192
    %v194 = vpop.f32.mrb[0].mxu0
    %195 = vmatprep.mubr.f32.mxu0 0.0
    %196 = vmatmul.mubr.f32.gmra.mrb[0].mxu0 %v49
    %v197 = vpop.f32.mrb[0].mxu0
    %v198 = vadd.f32 0.0, %v197
    %v199 = vpop.f32.mrb[0].mxu0
    %200 = vdwg.mxu0
    %201 = vmatprep.subr.mxu0 0.0
    %202 = vmatpush1.msra.mxu0 %v36
    %203 = vmatprep.subr.mxu0 0.0
    %204 = vmatpush1.msra.mxu0 %v37
    %205 = vmatprep.subr.mxu0 0.0
    %206 = vmatpush1.msra.mxu0 %v38
    %207 = vmatprep.subr.mxu0 0.0
    %208 = vmatpush1.msra.mxu0 %v39
    %209 = vmatprep.subr.mxu0 0.0
    %210 = vmatpush1.msra.mxu0 0.0
    %211 = vmatprep.subr.mxu0 0.0
    %212 = vmatpush1.msra.mxu0 0.0
    %213 = vmatprep.subr.mxu0 0.0
    %214 = vmatpush1.msra.mxu0 0.0
    %215 = vmatprep.subr.mxu0 0.0
    %216 = vmatpush1.msra.mxu0 0.0
    %217 = vmatprep.subr.mxu0 0.0
    %218 = vmatpush1.msra.mxu0 0.0
    %219 = vmatprep.subr.mxu0 0.0
    %220 = vmatpush1.msra.mxu0 0.0
    %221 = vmatprep.subr.mxu0 0.0
    %222 = vmatpush1.msra.mxu0 0.0
    %223 = vmatprep.subr.mxu0 0.0
    %224 = vmatpush1.msra.mxu0 0.0
    %225 = vmatprep.subr.mxu0 0.0
    %226 = vmatpush1.msra.mxu0 0.0
    %227 = vmatprep.subr.mxu0 0.0
    %228 = vmatpush1.msra.mxu0 0.0
    %229 = vmatprep.subr.mxu0 0.0
    %230 = vmatpush1.msra.mxu0 0.0
    %231 = vmatprep.subr.mxu0 0.0
    %232 = vmatpush1.msra.mxu0 0.0
    %233 = vmatprep.subr.mxu0 0.0
    %234 = vmatpush1.msra.mxu0 0.0
    %235 = vmatprep.subr.mxu0 0.0
    %236 = vmatpush1.msra.mxu0 0.0
    %237 = vmatprep.subr.mxu0 0.0
    %238 = vmatpush1.msra.mxu0 0.0
    %239 = vmatprep.subr.mxu0 0.0
    %240 = vmatpush1.msra.mxu0 0.0
    %241 = vmatprep.subr.mxu0 0.0
    %242 = vmatpush1.msra.mxu0 0.0
    %243 = vmatprep.subr.mxu0 0.0
    %244 = vmatpush1.msra.mxu0 0.0
    %245 = vmatprep.subr.mxu0 0.0
    %246 = vmatpush1.msra.mxu0 0.0
    %247 = vmatprep.subr.mxu0 0.0
    %248 = vmatpush1.msra.mxu0 0.0
    %249 = vmatprep.subr.mxu0 0.0
    %250 = vmatpush1.msra.mxu0 0.0
    %251 = vmatprep.subr.mxu0 0.0
    %252 = vmatpush1.msra.mxu0 0.0
    %253 = vmatprep.subr.mxu0 0.0
    %254 = vmatpush1.msra.mxu0 0.0
    %255 = vmatprep.subr.mxu0 0.0
    %256 = vmatpush1.msra.mxu0 0.0
    %257 = vmatprep.subr.mxu0 0.0
    %258 = vmatpush1.msra.mxu0 0.0
    %259 = vmatprep.subr.mxu0 0.0
    %260 = vmatpush1.msra.mxu0 0.0
    %261 = vmatprep.subr.mxu0 0.0
    %262 = vmatpush1.msra.mxu0 0.0
    %263 = vmatprep.subr.mxu0 0.0
    %264 = vmatpush1.msra.mxu0 0.0
    %265 = vmatprep.mubr.f32.mxu0 0.0
    %266 = vmatmul.mubr.f32.gmra.mrb[0].mxu0 %v46
    %v267 = vpop.f32.mrb[0].mxu0
    %v268 = vadd.f32 0.0, %v267
    %v269 = vpop.f32.mrb[0].mxu0
    %270 = vmatprep.mubr.f32.mxu0 0.0
    %271 = vmatmul.mubr.f32.gmra.mrb[0].mxu0 %v49
    %v272 = vpop.f32.mrb[0].mxu0
    %v273 = vadd.f32 0.0, %v272
    %v274 = vpop.f32.mrb[0].mxu0
    %275 = vdwg.mxu0
    %276 = vmatprep.subr.mxu0 0.0
    %277 = vmatpush1.msra.mxu0 %v40
    %278 = vmatprep.subr.mxu0 0.0
    %279 = vmatpush1.msra.mxu0 %v41
    %280 = vmatprep.subr.mxu0 0.0
    %281 = vmatpush1.msra.mxu0 %v42
    %282 = vmatprep.subr.mxu0 0.0
    %283 = vmatpush1.msra.mxu0 %v43
    %284 = vmatprep.subr.mxu0 0.0
    %285 = vmatpush1.msra.mxu0 0.0
    %286 = vmatprep.subr.mxu0 0.0
    %287 = vmatpush1.msra.mxu0 0.0
    %288 = vmatprep.subr.mxu0 0.0
    %289 = vmatpush1.msra.mxu0 0.0
    %290 = vmatprep.subr.mxu0 0.0
    %291 = vmatpush1.msra.mxu0 0.0
    %292 = vmatprep.subr.mxu0 0.0
    %293 = vmatpush1.msra.mxu0 0.0
    %294 = vmatprep.subr.mxu0 0.0
    %295 = vmatpush1.msra.mxu0 0.0
    %296 = vmatprep.subr.mxu0 0.0
    %297 = vmatpush1.msra.mxu0 0.0
    %298 = vmatprep.subr.mxu0 0.0
    %299 = vmatpush1.msra.mxu0 0.0
    %300 = vmatprep.subr.mxu0 0.0
    %301 = vmatpush1.msra.mxu0 0.0
    %302 = vmatprep.subr.mxu0 0.0
    %303 = vmatpush1.msra.mxu0 0.0
    %304 = vmatprep.subr.mxu0 0.0
    %305 = vmatpush1.msra.mxu0 0.0
    %306 = vmatprep.subr.mxu0 0.0
    %307 = vmatpush1.msra.mxu0 0.0
    %308 = vmatprep.subr.mxu0 0.0
    %309 = vmatpush1.msra.mxu0 0.0
    %310 = vmatprep.subr.mxu0 0.0
    %311 = vmatpush1.msra.mxu0 0.0
    %312 = vmatprep.subr.mxu0 0.0
    %313 = vmatpush1.msra.mxu0 0.0
    %314 = vmatprep.subr.mxu0 0.0
    %315 = vmatpush1.msra.mxu0 0.0
    %316 = vmatprep.subr.mxu0 0.0
    %317 = vmatpush1.msra.mxu0 0.0
    %318 = vmatprep.subr.mxu0 0.0
    %319 = vmatpush1.msra.mxu0 0.0
    %320 = vmatprep.subr.mxu0 0.0
    %321 = vmatpush1.msra.mxu0 0.0
    %322 = vmatprep.subr.mxu0 0.0
    %323 = vmatpush1.msra.mxu0 0.0
    %324 = vmatprep.subr.mxu0 0.0
    %325 = vmatpush1.msra.mxu0 0.0
    %326 = vmatprep.subr.mxu0 0.0
    %327 = vmatpush1.msra.mxu0 0.0
    %328 = vmatprep.subr.mxu0 0.0
    %329 = vmatpush1.msra.mxu0 0.0
    %330 = vmatprep.subr.mxu0 0.0
    %331 = vmatpush1.msra.mxu0 0.0
    %332 = vmatprep.subr.mxu0 0.0
    %333 = vmatpush1.msra.mxu0 0.0
    %334 = vmatprep.subr.mxu0 0.0
    %335 = vmatpush1.msra.mxu0 0.0
    %336 = vmatprep.subr.mxu0 0.0
    %337 = vmatpush1.msra.mxu0 0.0
    %338 = vmatprep.subr.mxu0 0.0
    %339 = vmatpush1.msra.mxu0 0.0
    %340 = vmatprep.mubr.f32.mxu0 0.0
    %341 = vmatmul.mubr.f32.gmra.mrb[0].mxu0 %v46
    %v342 = vpop.f32.mrb[0].mxu0
    %v343 = vadd.f32 0.0, %v342
    %v344 = vpop.f32.mrb[0].mxu0
    %345 = vmatprep.mubr.f32.mxu0 0.0
    %346 = vmatmul.mubr.f32.gmra.mrb[0].mxu0 %v49
    %v347 = vpop.f32.mrb[0].mxu0
    %v348 = vadd.f32 0.0, %v347
    %v349 = vpop.f32.mrb[0].mxu0
    %350 = vdwg.mxu0
    %s351 = scalar_lea.vmem %s2, 128
    %v352 = vld [vmem:[%s351] sm:$0xff]
    %v353 = vld [vmem:[%s351 + $0x8] sm:$0xff]
    %v354 = vld [vmem:[%s351 + $0x10] sm:$0xff]
    %v355 = vld [vmem:[%s351 + $0x18] sm:$0xff]
    %v356 = vld [vmem:[%s351 + $0x20] sm:$0xff]
    %v357 = vld [vmem:[%s351 + $0x28] sm:$0xff]
    %v358 = vld [vmem:[%s351 + $0x30] sm:$0xff]
    %v359 = vld [vmem:[%s351 + $0x38] sm:$0xff]
    %v360 = vld [vmem:[%s351 + $0x40] sm:$0xff]
    %v361 = vld [vmem:[%s351 + $0x48] sm:$0xff]
    %v362 = vld [vmem:[%s351 + $0x50] sm:$0xff]
    %v363 = vld [vmem:[%s351 + $0x58] sm:$0xff]
    %v364 = vld [vmem:[%s351 + $0x60] sm:$0xff]
    %v365 = vld [vmem:[%s351 + $0x68] sm:$0xff]
    %v366 = vld [vmem:[%s351 + $0x70] sm:$0xff]
    %v367 = vld [vmem:[%s351 + $0x78] sm:$0xff]
    %368 = vmatprep.subr.mxu0 0.0
    %369 = vmatpush1.msra.mxu0 %v352
    %370 = vmatprep.subr.mxu0 0.0
    %371 = vmatpush1.msra.mxu0 %v353
    %372 = vmatprep.subr.mxu0 0.0
    %373 = vmatpush1.msra.mxu0 %v354
    %374 = vmatprep.subr.mxu0 0.0
    %375 = vmatpush1.msra.mxu0 %v355
    %376 = vmatprep.subr.mxu0 0.0
    %377 = vmatpush1.msra.mxu0 0.0
    %378 = vmatprep.subr.mxu0 0.0
    %379 = vmatpush1.msra.mxu0 0.0
    %380 = vmatprep.subr.mxu0 0.0
    %381 = vmatpush1.msra.mxu0 0.0
    %382 = vmatprep.subr.mxu0 0.0
    %383 = vmatpush1.msra.mxu0 0.0
    %384 = vmatprep.subr.mxu0 0.0
    %385 = vmatpush1.msra.mxu0 0.0
    %386 = vmatprep.subr.mxu0 0.0
    %387 = vmatpush1.msra.mxu0 0.0
    %388 = vmatprep.subr.mxu0 0.0
    %389 = vmatpush1.msra.mxu0 0.0
    %390 = vmatprep.subr.mxu0 0.0
    %391 = vmatpush1.msra.mxu0 0.0
    %392 = vmatprep.subr.mxu0 0.0
    %393 = vmatpush1.msra.mxu0 0.0
    %394 = vmatprep.subr.mxu0 0.0
    %395 = vmatpush1.msra.mxu0 0.0
    %396 = vmatprep.subr.mxu0 0.0
    %397 = vmatpush1.msra.mxu0 0.0
    %398 = vmatprep.subr.mxu0 0.0
    %399 = vmatpush1.msra.mxu0 0.0
    %400 = vmatprep.subr.mxu0 0.0
    %401 = vmatpush1.msra.mxu0 0.0
    %402 = vmatprep.subr.mxu0 0.0
    %403 = vmatpush1.msra.mxu0 0.0
    %404 = vmatprep.subr.mxu0 0.0
    %405 = vmatpush1.msra.mxu0 0.0
    %406 = vmatprep.subr.mxu0 0.0
    %407 = vmatpush1.msra.mxu0 0.0
    %408 = vmatprep.subr.mxu0 0.0
    %409 = vmatpush1.msra.mxu0 0.0
    %410 = vmatprep.subr.mxu0 0.0
    %411 = vmatpush1.msra.mxu0 0.0
    %412 = vmatprep.subr.mxu0 0.0
    %413 = vmatpush1.msra.mxu0 0.0
    %414 = vmatprep.subr.mxu0 0.0
    %415 = vmatpush1.msra.mxu0 0.0
    %416 = vmatprep.subr.mxu0 0.0
    %417 = vmatpush1.msra.mxu0 0.0
    %418 = vmatprep.subr.mxu0 0.0
    %419 = vmatpush1.msra.mxu0 0.0
    %420 = vmatprep.subr.mxu0 0.0
    %421 = vmatpush1.msra.mxu0 0.0
    %422 = vmatprep.subr.mxu0 0.0
    %423 = vmatpush1.msra.mxu0 0.0
    %424 = vmatprep.subr.mxu0 0.0
    %425 = vmatpush1.msra.mxu0 0.0
    %426 = vmatprep.subr.mxu0 0.0
    %427 = vmatpush1.msra.mxu0 0.0
    %428 = vmatprep.subr.mxu0 0.0
    %429 = vmatpush1.msra.mxu0 0.0
    %430 = vmatprep.subr.mxu0 0.0
    %431 = vmatpush1.msra.mxu0 0.0
    %432 = vmatprep.mubr.f32.mxu0 0.0
    %433 = vmatmul.mubr.f32.gmra.mrb[0].mxu0 %v46
    %v434 = vpop.f32.mrb[0].mxu0
    %v435 = vadd.f32 0.0, %v434
    %v436 = vpop.f32.mrb[0].mxu0
    %437 = vmatprep.mubr.f32.mxu0 0.0
    %438 = vmatmul.mubr.f32.gmra.mrb[0].mxu0 %v49
    %v439 = vpop.f32.mrb[0].mxu0
    %v440 = vadd.f32 0.0, %v439
    %v441 = vpop.f32.mrb[0].mxu0
    %442 = vdwg.mxu0
    %443 = vmatprep.subr.mxu0 0.0
    %444 = vmatpush1.msra.mxu0 %v356
    %445 = vmatprep.subr.mxu0 0.0
    %446 = vmatpush1.msra.mxu0 %v357
    %447 = vmatprep.subr.mxu0 0.0
    %448 = vmatpush1.msra.mxu0 %v358
    %449 = vmatprep.subr.mxu0 0.0
    %450 = vmatpush1.msra.mxu0 %v359
    %451 = vmatprep.subr.mxu0 0.0
    %452 = vmatpush1.msra.mxu0 0.0
    %453 = vmatprep.subr.mxu0 0.0
    %454 = vmatpush1.msra.mxu0 0.0
    %455 = vmatprep.subr.mxu0 0.0
    %456 = vmatpush1.msra.mxu0 0.0
    %457 = vmatprep.subr.mxu0 0.0
    %458 = vmatpush1.msra.mxu0 0.0
    %459 = vmatprep.subr.mxu0 0.0
    %460 = vmatpush1.msra.mxu0 0.0
    %461 = vmatprep.subr.mxu0 0.0
    %462 = vmatpush1.msra.mxu0 0.0
    %463 = vmatprep.subr.mxu0 0.0
    %464 = vmatpush1.msra.mxu0 0.0
    %465 = vmatprep.subr.mxu0 0.0
    %466 = vmatpush1.msra.mxu0 0.0
    %467 = vmatprep.subr.mxu0 0.0
    %468 = vmatpush1.msra.mxu0 0.0
    %469 = vmatprep.subr.mxu0 0.0
    %470 = vmatpush1.msra.mxu0 0.0
    %471 = vmatprep.subr.mxu0 0.0
    %472 = vmatpush1.msra.mxu0 0.0
    %473 = vmatprep.subr.mxu0 0.0
    %474 = vmatpush1.msra.mxu0 0.0
    %475 = vmatprep.subr.mxu0 0.0
    %476 = vmatpush1.msra.mxu0 0.0
    %477 = vmatprep.subr.mxu0 0.0
    %478 = vmatpush1.msra.mxu0 0.0
    %479 = vmatprep.subr.mxu0 0.0
    %480 = vmatpush1.msra.mxu0 0.0
    %481 = vmatprep.subr.mxu0 0.0
    %482 = vmatpush1.msra.mxu0 0.0
    %483 = vmatprep.subr.mxu0 0.0
    %484 = vmatpush1.msra.mxu0 0.0
    %485 = vmatprep.subr.mxu0 0.0
    %486 = vmatpush1.msra.mxu0 0.0
    %487 = vmatprep.subr.mxu0 0.0
    %488 = vmatpush1.msra.mxu0 0.0
    %489 = vmatprep.subr.mxu0 0.0
    %490 = vmatpush1.msra.mxu0 0.0
    %491 = vmatprep.subr.mxu0 0.0
    %492 = vmatpush1.msra.mxu0 0.0
    %493 = vmatprep.subr.mxu0 0.0
    %494 = vmatpush1.msra.mxu0 0.0
    %495 = vmatprep.subr.mxu0 0.0
    %496 = vmatpush1.msra.mxu0 0.0
    %497 = vmatprep.subr.mxu0 0.0
    %498 = vmatpush1.msra.mxu0 0.0
    %499 = vmatprep.subr.mxu0 0.0
    %500 = vmatpush1.msra.mxu0 0.0
    %501 = vmatprep.subr.mxu0 0.0
    %502 = vmatpush1.msra.mxu0 0.0
    %503 = vmatprep.subr.mxu0 0.0
    %504 = vmatpush1.msra.mxu0 0.0
    %505 = vmatprep.subr.mxu0 0.0
    %506 = vmatpush1.msra.mxu0 0.0
    %507 = vmatprep.mubr.f32.mxu0 0.0
    %508 = vmatmul.mubr.f32.gmra.mrb[0].mxu0 %v46
    %v509 = vpop.f32.mrb[0].mxu0
    %v510 = vadd.f32 0.0, %v509
    %v511 = vpop.f32.mrb[0].mxu0
    %512 = vmatprep.mubr.f32.mxu0 0.0
    %513 = vmatmul.mubr.f32.gmra.mrb[0].mxu0 %v49
    %v514 = vpop.f32.mrb[0].mxu0
    %v515 = vadd.f32 0.0, %v514
    %v516 = vpop.f32.mrb[0].mxu0
    %517 = vdwg.mxu0
    %518 = vmatprep.subr.mxu0 0.0
    %519 = vmatpush1.msra.mxu0 %v360
    %520 = vmatprep.subr.mxu0 0.0
    %521 = vmatpush1.msra.mxu0 %v361
    %522 = vmatprep.subr.mxu0 0.0
    %523 = vmatpush1.msra.mxu0 %v362
    %524 = vmatprep.subr.mxu0 0.0
    %525 = vmatpush1.msra.mxu0 %v363
    %526 = vmatprep.subr.mxu0 0.0
    %527 = vmatpush1.msra.mxu0 0.0
    %528 = vmatprep.subr.mxu0 0.0
    %529 = vmatpush1.msra.mxu0 0.0
    %530 = vmatprep.subr.mxu0 0.0
    %531 = vmatpush1.msra.mxu0 0.0
    %532 = vmatprep.subr.mxu0 0.0
    %533 = vmatpush1.msra.mxu0 0.0
    %534 = vmatprep.subr.mxu0 0.0
    %535 = vmatpush1.msra.mxu0 0.0
    %536 = vmatprep.subr.mxu0 0.0
    %537 = vmatpush1.msra.mxu0 0.0
    %538 = vmatprep.subr.mxu0 0.0
    %539 = vmatpush1.msra.mxu0 0.0
    %540 = vmatprep.subr.mxu0 0.0
    %541 = vmatpush1.msra.mxu0 0.0
    %542 = vmatprep.subr.mxu0 0.0
    %543 = vmatpush1.msra.mxu0 0.0
    %544 = vmatprep.subr.mxu0 0.0
    %545 = vmatpush1.msra.mxu0 0.0
    %546 = vmatprep.subr.mxu0 0.0
    %547 = vmatpush1.msra.mxu0 0.0
    %548 = vmatprep.subr.mxu0 0.0
    %549 = vmatpush1.msra.mxu0 0.0
    %550 = vmatprep.subr.mxu0 0.0
    %551 = vmatpush1.msra.mxu0 0.0
    %552 = vmatprep.subr.mxu0 0.0
    %553 = vmatpush1.msra.mxu0 0.0
    %554 = vmatprep.subr.mxu0 0.0
    %555 = vmatpush1.msra.mxu0 0.0
    %556 = vmatprep.subr.mxu0 0.0
    %557 = vmatpush1.msra.mxu0 0.0
    %558 = vmatprep.subr.mxu0 0.0
    %559 = vmatpush1.msra.mxu0 0.0
    %560 = vmatprep.subr.mxu0 0.0
    %561 = vmatpush1.msra.mxu0 0.0
    %562 = vmatprep.subr.mxu0 0.0
    %563 = vmatpush1.msra.mxu0 0.0
    %564 = vmatprep.subr.mxu0 0.0
    %565 = vmatpush1.msra.mxu0 0.0
    %566 = vmatprep.subr.mxu0 0.0
    %567 = vmatpush1.msra.mxu0 0.0
    %568 = vmatprep.subr.mxu0 0.0
    %569 = vmatpush1.msra.mxu0 0.0
    %570 = vmatprep.subr.mxu0 0.0
    %571 = vmatpush1.msra.mxu0 0.0
    %572 = vmatprep.subr.mxu0 0.0
    %573 = vmatpush1.msra.mxu0 0.0
    %574 = vmatprep.subr.mxu0 0.0
    %575 = vmatpush1.msra.mxu0 0.0
    %576 = vmatprep.subr.mxu0 0.0
    %577 = vmatpush1.msra.mxu0 0.0
    %578 = vmatprep.subr.mxu0 0.0
    %579 = vmatpush1.msra.mxu0 0.0
    %580 = vmatprep.subr.mxu0 0.0
    %581 = vmatpush1.msra.mxu0 0.0
    %582 = vmatprep.mubr.f32.mxu0 0.0
    %583 = vmatmul.mubr.f32.gmra.mrb[0].mxu0 %v46
    %v584 = vpop.f32.mrb[0].mxu0
    %v585 = vadd.f32 0.0, %v584
    %v586 = vpop.f32.mrb[0].mxu0
    %587 = vmatprep.mubr.f32.mxu0 0.0
    %588 = vmatmul.mubr.f32.gmra.mrb[0].mxu0 %v49
    %v589 = vpop.f32.mrb[0].mxu0
    %v590 = vadd.f32 0.0, %v589
    %v591 = vpop.f32.mrb[0].mxu0
    %592 = vdwg.mxu0
    %593 = vmatprep.subr.mxu0 0.0
    %594 = vmatpush1.msra.mxu0 %v364
    %595 = vmatprep.subr.mxu0 0.0
    %596 = vmatpush1.msra.mxu0 %v365
    %597 = vmatprep.subr.mxu0 0.0
    %598 = vmatpush1.msra.mxu0 %v366
    %599 = vmatprep.subr.mxu0 0.0
    %600 = vmatpush1.msra.mxu0 %v367
    %601 = vmatprep.subr.mxu0 0.0
    %602 = vmatpush1.msra.mxu0 0.0
    %603 = vmatprep.subr.mxu0 0.0
    %604 = vmatpush1.msra.mxu0 0.0
    %605 = vmatprep.subr.mxu0 0.0
    %606 = vmatpush1.msra.mxu0 0.0
    %607 = vmatprep.subr.mxu0 0.0
    %608 = vmatpush1.msra.mxu0 0.0
    %609 = vmatprep.subr.mxu0 0.0
    %610 = vmatpush1.msra.mxu0 0.0
    %611 = vmatprep.subr.mxu0 0.0
    %612 = vmatpush1.msra.mxu0 0.0
    %613 = vmatprep.subr.mxu0 0.0
    %614 = vmatpush1.msra.mxu0 0.0
    %615 = vmatprep.subr.mxu0 0.0
    %616 = vmatpush1.msra.mxu0 0.0
    %617 = vmatprep.subr.mxu0 0.0
    %618 = vmatpush1.msra.mxu0 0.0
    %619 = vmatprep.subr.mxu0 0.0
    %620 = vmatpush1.msra.mxu0 0.0
    %621 = vmatprep.subr.mxu0 0.0
    %622 = vmatpush1.msra.mxu0 0.0
    %623 = vmatprep.subr.mxu0 0.0
    %624 = vmatpush1.msra.mxu0 0.0
    %625 = vmatprep.subr.mxu0 0.0
    %626 = vmatpush1.msra.mxu0 0.0
    %627 = vmatprep.subr.mxu0 0.0
    %628 = vmatpush1.msra.mxu0 0.0
    %629 = vmatprep.subr.mxu0 0.0
    %630 = vmatpush1.msra.mxu0 0.0
    %631 = vmatprep.subr.mxu0 0.0
    %632 = vmatpush1.msra.mxu0 0.0
    %633 = vmatprep.subr.mxu0 0.0
    %634 = vmatpush1.msra.mxu0 0.0
    %635 = vmatprep.subr.mxu0 0.0
    %636 = vmatpush1.msra.mxu0 0.0
    %637 = vmatprep.subr.mxu0 0.0
    %638 = vmatpush1.msra.mxu0 0.0
    %639 = vmatprep.subr.mxu0 0.0
    %640 = vmatpush1.msra.mxu0 0.0
    %641 = vmatprep.subr.mxu0 0.0
    %642 = vmatpush1.msra.mxu0 0.0
    %643 = vmatprep.subr.mxu0 0.0
    %644 = vmatpush1.msra.mxu0 0.0
    %645 = vmatprep.subr.mxu0 0.0
    %646 = vmatpush1.msra.mxu0 0.0
    %647 = vmatprep.subr.mxu0 0.0
    %648 = vmatpush1.msra.mxu0 0.0
    %649 = vmatprep.subr.mxu0 0.0
    %650 = vmatpush1.msra.mxu0 0.0
    %651 = vmatprep.subr.mxu0 0.0
    %652 = vmatpush1.msra.mxu0 0.0
    %653 = vmatprep.subr.mxu0 0.0
    %654 = vmatpush1.msra.mxu0 0.0
    %655 = vmatprep.subr.mxu0 0.0
    %656 = vmatpush1.msra.mxu0 0.0
    %657 = vmatprep.mubr.f32.mxu0 0.0
    %658 = vmatmul.mubr.f32.gmra.mrb[0].mxu0 %v46
    %v659 = vpop.f32.mrb[0].mxu0
    %v660 = vadd.f32 0.0, %v659
    %v661 = vpop.f32.mrb[0].mxu0
    %662 = vmatprep.mubr.f32.mxu0 0.0
    %663 = vmatmul.mubr.f32.gmra.mrb[0].mxu0 %v49
    %v664 = vpop.f32.mrb[0].mxu0
    %v665 = vadd.f32 0.0, %v664
    %v666 = vpop.f32.mrb[0].mxu0
    %667 = vdwg.mxu0
    %s668 = scalar_lea.vmem %s2, 256
    %v669 = vld [vmem:[%s668] sm:$0xff]
    %v670 = vld [vmem:[%s668 + $0x8] sm:$0xff]
    %v671 = vld [vmem:[%s668 + $0x10] sm:$0xff]
    %v672 = vld [vmem:[%s668 + $0x18] sm:$0xff]
    %v673 = vld [vmem:[%s668 + $0x20] sm:$0xff]
    %v674 = vld [vmem:[%s668 + $0x28] sm:$0xff]
    %v675 = vld [vmem:[%s668 + $0x30] sm:$0xff]
    %v676 = vld [vmem:[%s668 + $0x38] sm:$0xff]
    %v677 = vld [vmem:[%s668 + $0x40] sm:$0xff]
    %v678 = vld [vmem:[%s668 + $0x48] sm:$0xff]
    %v679 = vld [vmem:[%s668 + $0x50] sm:$0xff]
    %v680 = vld [vmem:[%s668 + $0x58] sm:$0xff]
    %v681 = vld [vmem:[%s668 + $0x60] sm:$0xff]
    %v682 = vld [vmem:[%s668 + $0x68] sm:$0xff]
    %v683 = vld [vmem:[%s668 + $0x70] sm:$0xff]
    %v684 = vld [vmem:[%s668 + $0x78] sm:$0xff]
    %685 = vmatprep.subr.mxu0 0.0
    %686 = vmatpush1.msra.mxu0 %v669
    %687 = vmatprep.subr.mxu0 0.0
    %688 = vmatpush1.msra.mxu0 %v670
    %689 = vmatprep.subr.mxu0 0.0
    %690 = vmatpush1.msra.mxu0 %v671
    %691 = vmatprep.subr.mxu0 0.0
    %692 = vmatpush1.msra.mxu0 %v672
    %693 = vmatprep.subr.mxu0 0.0
    %694 = vmatpush1.msra.mxu0 0.0
    %695 = vmatprep.subr.mxu0 0.0
    %696 = vmatpush1.msra.mxu0 0.0
    %697 = vmatprep.subr.mxu0 0.0
    %698 = vmatpush1.msra.mxu0 0.0
    %699 = vmatprep.subr.mxu0 0.0
    %700 = vmatpush1.msra.mxu0 0.0
    %701 = vmatprep.subr.mxu0 0.0
    %702 = vmatpush1.msra.mxu0 0.0
    %703 = vmatprep.subr.mxu0 0.0
    %704 = vmatpush1.msra.mxu0 0.0
    %705 = vmatprep.subr.mxu0 0.0
    %706 = vmatpush1.msra.mxu0 0.0
    %707 = vmatprep.subr.mxu0 0.0
    %708 = vmatpush1.msra.mxu0 0.0
    %709 = vmatprep.subr.mxu0 0.0
    %710 = vmatpush1.msra.mxu0 0.0
    %711 = vmatprep.subr.mxu0 0.0
    %712 = vmatpush1.msra.mxu0 0.0
    %713 = vmatprep.subr.mxu0 0.0
    %714 = vmatpush1.msra.mxu0 0.0
    %715 = vmatprep.subr.mxu0 0.0
    %716 = vmatpush1.msra.mxu0 0.0
    %717 = vmatprep.subr.mxu0 0.0
    %718 = vmatpush1.msra.mxu0 0.0
    %719 = vmatprep.subr.mxu0 0.0
    %720 = vmatpush1.msra.mxu0 0.0
    %721 = vmatprep.subr.mxu0 0.0
    %722 = vmatpush1.msra.mxu0 0.0
    %723 = vmatprep.subr.mxu0 0.0
    %724 = vmatpush1.msra.mxu0 0.0
    %725 = vmatprep.subr.mxu0 0.0
    %726 = vmatpush1.msra.mxu0 0.0
    %727 = vmatprep.subr.mxu0 0.0
    %728 = vmatpush1.msra.mxu0 0.0
    %729 = vmatprep.subr.mxu0 0.0
    %730 = vmatpush1.msra.mxu0 0.0
    %731 = vmatprep.subr.mxu0 0.0
    %732 = vmatpush1.msra.mxu0 0.0
    %733 = vmatprep.subr.mxu0 0.0
    %734 = vmatpush1.msra.mxu0 0.0
    %735 = vmatprep.subr.mxu0 0.0
    %736 = vmatpush1.msra.mxu0 0.0
    %737 = vmatprep.subr.mxu0 0.0
    %738 = vmatpush1.msra.mxu0 0.0
    %739 = vmatprep.subr.mxu0 0.0
    %740 = vmatpush1.msra.mxu0 0.0
    %741 = vmatprep.subr.mxu0 0.0
    %742 = vmatpush1.msra.mxu0 0.0
    %743 = vmatprep.subr.mxu0 0.0
    %744 = vmatpush1.msra.mxu0 0.0
    %745 = vmatprep.subr.mxu0 0.0
    %746 = vmatpush1.msra.mxu0 0.0
    %747 = vmatprep.subr.mxu0 0.0
    %748 = vmatpush1.msra.mxu0 0.0
    %749 = vmatprep.mubr.f32.mxu0 0.0
    %750 = vmatmul.mubr.f32.gmra.mrb[0].mxu0 %v46
    %v751 = vpop.f32.mrb[0].mxu0
    %v752 = vadd.f32 0.0, %v751
    %v753 = vpop.f32.mrb[0].mxu0
    %754 = vmatprep.mubr.f32.mxu0 0.0
    %755 = vmatmul.mubr.f32.gmra.mrb[0].mxu0 %v49
    %v756 = vpop.f32.mrb[0].mxu0
    %v757 = vadd.f32 0.0, %v756
    %v758 = vpop.f32.mrb[0].mxu0
    %759 = vdwg.mxu0
    %760 = vmatprep.subr.mxu0 0.0
    %761 = vmatpush1.msra.mxu0 %v673
    %762 = vmatprep.subr.mxu0 0.0
    %763 = vmatpush1.msra.mxu0 %v674
    %764 = vmatprep.subr.mxu0 0.0
    %765 = vmatpush1.msra.mxu0 %v675
    %766 = vmatprep.subr.mxu0 0.0
    %767 = vmatpush1.msra.mxu0 %v676
    %768 = vmatprep.subr.mxu0 0.0
    %769 = vmatpush1.msra.mxu0 0.0
    %770 = vmatprep.subr.mxu0 0.0
    %771 = vmatpush1.msra.mxu0 0.0
    %772 = vmatprep.subr.mxu0 0.0
    %773 = vmatpush1.msra.mxu0 0.0
    %774 = vmatprep.subr.mxu0 0.0
    %775 = vmatpush1.msra.mxu0 0.0
    %776 = vmatprep.subr.mxu0 0.0
    %777 = vmatpush1.msra.mxu0 0.0
    %778 = vmatprep.subr.mxu0 0.0
    %779 = vmatpush1.msra.mxu0 0.0
    %780 = vmatprep.subr.mxu0 0.0
    %781 = vmatpush1.msra.mxu0 0.0
    %782 = vmatprep.subr.mxu0 0.0
    %783 = vmatpush1.msra.mxu0 0.0
    %784 = vmatprep.subr.mxu0 0.0
    %785 = vmatpush1.msra.mxu0 0.0
    %786 = vmatprep.subr.mxu0 0.0
    %787 = vmatpush1.msra.mxu0 0.0
    %788 = vmatprep.subr.mxu0 0.0
    %789 = vmatpush1.msra.mxu0 0.0
    %790 = vmatprep.subr.mxu0 0.0
    %791 = vmatpush1.msra.mxu0 0.0
    %792 = vmatprep.subr.mxu0 0.0
    %793 = vmatpush1.msra.mxu0 0.0
    %794 = vmatprep.subr.mxu0 0.0
    %795 = vmatpush1.msra.mxu0 0.0
    %796 = vmatprep.subr.mxu0 0.0
    %797 = vmatpush1.msra.mxu0 0.0
    %798 = vmatprep.subr.mxu0 0.0
    %799 = vmatpush1.msra.mxu0 0.0
    %800 = vmatprep.subr.mxu0 0.0
    %801 = vmatpush1.msra.mxu0 0.0
    %802 = vmatprep.subr.mxu0 0.0
    %803 = vmatpush1.msra.mxu0 0.0
    %804 = vmatprep.subr.mxu0 0.0
    %805 = vmatpush1.msra.mxu0 0.0
    %806 = vmatprep.subr.mxu0 0.0
    %807 = vmatpush1.msra.mxu0 0.0
    %808 = vmatprep.subr.mxu0 0.0
    %809 = vmatpush1.msra.mxu0 0.0
    %810 = vmatprep.subr.mxu0 0.0
    %811 = vmatpush1.msra.mxu0 0.0
    %812 = vmatprep.subr.mxu0 0.0
    %813 = vmatpush1.msra.mxu0 0.0
    %814 = vmatprep.subr.mxu0 0.0
    %815 = vmatpush1.msra.mxu0 0.0
    %816 = vmatprep.subr.mxu0 0.0
    %817 = vmatpush1.msra.mxu0 0.0
    %818 = vmatprep.subr.mxu0 0.0
    %819 = vmatpush1.msra.mxu0 0.0
    %820 = vmatprep.subr.mxu0 0.0
    %821 = vmatpush1.msra.mxu0 0.0
    %822 = vmatprep.subr.mxu0 0.0
    %823 = vmatpush1.msra.mxu0 0.0
    %824 = vmatprep.mubr.f32.mxu0 0.0
    %825 = vmatmul.mubr.f32.gmra.mrb[0].mxu0 %v46
    %v826 = vpop.f32.mrb[0].mxu0
    %v827 = vadd.f32 0.0, %v826
    %v828 = vpop.f32.mrb[0].mxu0
    %829 = vmatprep.mubr.f32.mxu0 0.0
    %830 = vmatmul.mubr.f32.gmra.mrb[0].mxu0 %v49
    %v831 = vpop.f32.mrb[0].mxu0
    %v832 = vadd.f32 0.0, %v831
    %v833 = vpop.f32.mrb[0].mxu0
    %834 = vdwg.mxu0
    %835 = vmatprep.subr.mxu0 0.0
    %836 = vmatpush1.msra.mxu0 %v677
    %837 = vmatprep.subr.mxu0 0.0
    %838 = vmatpush1.msra.mxu0 %v678
    %839 = vmatprep.subr.mxu0 0.0
    %840 = vmatpush1.msra.mxu0 %v679
    %841 = vmatprep.subr.mxu0 0.0
    %842 = vmatpush1.msra.mxu0 %v680
    %843 = vmatprep.subr.mxu0 0.0
    %844 = vmatpush1.msra.mxu0 0.0
    %845 = vmatprep.subr.mxu0 0.0
    %846 = vmatpush1.msra.mxu0 0.0
    %847 = vmatprep.subr.mxu0 0.0
    %848 = vmatpush1.msra.mxu0 0.0
    %849 = vmatprep.subr.mxu0 0.0
    %850 = vmatpush1.msra.mxu0 0.0
    %851 = vmatprep.subr.mxu0 0.0
    %852 = vmatpush1.msra.mxu0 0.0
    %853 = vmatprep.subr.mxu0 0.0
    %854 = vmatpush1.msra.mxu0 0.0
    %855 = vmatprep.subr.mxu0 0.0
    %856 = vmatpush1.msra.mxu0 0.0
    %857 = vmatprep.subr.mxu0 0.0
    %858 = vmatpush1.msra.mxu0 0.0
    %859 = vmatprep.subr.mxu0 0.0
    %860 = vmatpush1.msra.mxu0 0.0
    %861 = vmatprep.subr.mxu0 0.0
    %862 = vmatpush1.msra.mxu0 0.0
    %863 = vmatprep.subr.mxu0 0.0
    %864 = vmatpush1.msra.mxu0 0.0
    %865 = vmatprep.subr.mxu0 0.0
    %866 = vmatpush1.msra.mxu0 0.0
    %867 = vmatprep.subr.mxu0 0.0
    %868 = vmatpush1.msra.mxu0 0.0
    %869 = vmatprep.subr.mxu0 0.0
    %870 = vmatpush1.msra.mxu0 0.0
    %871 = vmatprep.subr.mxu0 0.0
    %872 = vmatpush1.msra.mxu0 0.0
    %873 = vmatprep.subr.mxu0 0.0
    %874 = vmatpush1.msra.mxu0 0.0
    %875 = vmatprep.subr.mxu0 0.0
    %876 = vmatpush1.msra.mxu0 0.0
    %877 = vmatprep.subr.mxu0 0.0
    %878 = vmatpush1.msra.mxu0 0.0
    %879 = vmatprep.subr.mxu0 0.0
    %880 = vmatpush1.msra.mxu0 0.0
    %881 = vmatprep.subr.mxu0 0.0
    %882 = vmatpush1.msra.mxu0 0.0
    %883 = vmatprep.subr.mxu0 0.0
    %884 = vmatpush1.msra.mxu0 0.0
    %885 = vmatprep.subr.mxu0 0.0
    %886 = vmatpush1.msra.mxu0 0.0
    %887 = vmatprep.subr.mxu0 0.0
    %888 = vmatpush1.msra.mxu0 0.0
    %889 = vmatprep.subr.mxu0 0.0
    %890 = vmatpush1.msra.mxu0 0.0
    %891 = vmatprep.subr.mxu0 0.0
    %892 = vmatpush1.msra.mxu0 0.0
    %893 = vmatprep.subr.mxu0 0.0
    %894 = vmatpush1.msra.mxu0 0.0
    %895 = vmatprep.subr.mxu0 0.0
    %896 = vmatpush1.msra.mxu0 0.0
    %897 = vmatprep.subr.mxu0 0.0
    %898 = vmatpush1.msra.mxu0 0.0
    %899 = vmatprep.mubr.f32.mxu0 0.0
    %900 = vmatmul.mubr.f32.gmra.mrb[0].mxu0 %v46
    %v901 = vpop.f32.mrb[0].mxu0
    %v902 = vadd.f32 0.0, %v901
    %v903 = vpop.f32.mrb[0].mxu0
    %904 = vmatprep.mubr.f32.mxu0 0.0
    %905 = vmatmul.mubr.f32.gmra.mrb[0].mxu0 %v49
    %v906 = vpop.f32.mrb[0].mxu0
    %v907 = vadd.f32 0.0, %v906
    %v908 = vpop.f32.mrb[0].mxu0
    %909 = vdwg.mxu0
    %910 = vmatprep.subr.mxu0 0.0
    %911 = vmatpush1.msra.mxu0 %v681
    %912 = vmatprep.subr.mxu0 0.0
    %913 = vmatpush1.msra.mxu0 %v682
    %914 = vmatprep.subr.mxu0 0.0
    %915 = vmatpush1.msra.mxu0 %v683
    %916 = vmatprep.subr.mxu0 0.0
    %917 = vmatpush1.msra.mxu0 %v684
    %918 = vmatprep.subr.mxu0 0.0
    %919 = vmatpush1.msra.mxu0 0.0
    %920 = vmatprep.subr.mxu0 0.0
    %921 = vmatpush1.msra.mxu0 0.0
    %922 = vmatprep.subr.mxu0 0.0
    %923 = vmatpush1.msra.mxu0 0.0
    %924 = vmatprep.subr.mxu0 0.0
    %925 = vmatpush1.msra.mxu0 0.0
    %926 = vmatprep.subr.mxu0 0.0
    %927 = vmatpush1.msra.mxu0 0.0
    %928 = vmatprep.subr.mxu0 0.0
    %929 = vmatpush1.msra.mxu0 0.0
    %930 = vmatprep.subr.mxu0 0.0
    %931 = vmatpush1.msra.mxu0 0.0
    %932 = vmatprep.subr.mxu0 0.0
    %933 = vmatpush1.msra.mxu0 0.0
    %934 = vmatprep.subr.mxu0 0.0
    %935 = vmatpush1.msra.mxu0 0.0
    %936 = vmatprep.subr.mxu0 0.0
    %937 = vmatpush1.msra.mxu0 0.0
    %938 = vmatprep.subr.mxu0 0.0
    %939 = vmatpush1.msra.mxu0 0.0
    %940 = vmatprep.subr.mxu0 0.0
    %941 = vmatpush1.msra.mxu0 0.0
    %942 = vmatprep.subr.mxu0 0.0
    %943 = vmatpush1.msra.mxu0 0.0
    %944 = vmatprep.subr.mxu0 0.0
    %945 = vmatpush1.msra.mxu0 0.0
    %946 = vmatprep.subr.mxu0 0.0
    %947 = vmatpush1.msra.mxu0 0.0
    %948 = vmatprep.subr.mxu0 0.0
    %949 = vmatpush1.msra.mxu0 0.0
    %950 = vmatprep.subr.mxu0 0.0
    %951 = vmatpush1.msra.mxu0 0.0
    %952 = vmatprep.subr.mxu0 0.0
    %953 = vmatpush1.msra.mxu0 0.0
    %954 = vmatprep.subr.mxu0 0.0
    %955 = vmatpush1.msra.mxu0 0.0
    %956 = vmatprep.subr.mxu0 0.0
    %957 = vmatpush1.msra.mxu0 0.0
    %958 = vmatprep.subr.mxu0 0.0
    %959 = vmatpush1.msra.mxu0 0.0
    %960 = vmatprep.subr.mxu0 0.0
    %961 = vmatpush1.msra.mxu0 0.0
    %962 = vmatprep.subr.mxu0 0.0
    %963 = vmatpush1.msra.mxu0 0.0
    %964 = vmatprep.subr.mxu0 0.0
    %965 = vmatpush1.msra.mxu0 0.0
    %966 = vmatprep.subr.mxu0 0.0
    %967 = vmatpush1.msra.mxu0 0.0
    %968 = vmatprep.subr.mxu0 0.0
    %969 = vmatpush1.msra.mxu0 0.0
    %970 = vmatprep.subr.mxu0 0.0
    %971 = vmatpush1.msra.mxu0 0.0
    %972 = vmatprep.subr.mxu0 0.0
    %973 = vmatpush1.msra.mxu0 0.0
    %974 = vmatprep.mubr.f32.mxu0 0.0
    %975 = vmatmul.mubr.f32.gmra.mrb[0].mxu0 %v46
    %v976 = vpop.f32.mrb[0].mxu0
    %v977 = vadd.f32 0.0, %v976
    %v978 = vpop.f32.mrb[0].mxu0
    %979 = vmatprep.mubr.f32.mxu0 0.0
    %980 = vmatmul.mubr.f32.gmra.mrb[0].mxu0 %v49
    %v981 = vpop.f32.mrb[0].mxu0
    %v982 = vadd.f32 0.0, %v981
    %v983 = vpop.f32.mrb[0].mxu0
    %984 = vdwg.mxu0
    %vm985 = vcmask 64512
    %v987 = vsel %vm985, %v118, 0
    %v990 = vsel %vm985, %v123, 0
    %v993 = vsel %vm985, %v435, 0
    %v996 = vsel %vm985, %v440, 0
    %998 = vmatprep.subr.mxu0 0.0
    %999 = vmatpush1.xpose.msra.mxu0 %v993
    %1000 = vmatprep.subr.mxu0 0.0
    %1001 = vmatpush1.xpose.msra.mxu0 %v996
    %1002 = vmatprep.subr.mxu0 0.0
    %1003 = vmatpush1.xpose.msra.mxu0 0.0
    %1004 = vmatprep.subr.mxu0 0.0
    %1005 = vmatpush1.xpose.msra.mxu0 0.0
    %1006 = vmatprep.subr.mxu0 0.0
    %1007 = vmatpush1.xpose.msra.mxu0 0.0
    %1008 = vmatprep.subr.mxu0 0.0
    %1009 = vmatpush1.xpose.msra.mxu0 0.0
    %1010 = vmatprep.subr.mxu0 0.0
    %1011 = vmatpush1.xpose.msra.mxu0 0.0
    %1012 = vmatprep.subr.mxu0 0.0
    %1013 = vmatpush1.xpose.msra.mxu0 0.0
    %1014 = vmatprep.subr.mxu0 0.0
    %1015 = vmatpush1.xpose.msra.mxu0 0.0
    %1016 = vmatprep.subr.mxu0 0.0
    %1017 = vmatpush1.xpose.msra.mxu0 0.0
    %1018 = vmatprep.subr.mxu0 0.0
    %1019 = vmatpush1.xpose.msra.mxu0 0.0
    %1020 = vmatprep.subr.mxu0 0.0
    %1021 = vmatpush1.xpose.msra.mxu0 0.0
    %1022 = vmatprep.subr.mxu0 0.0
    %1023 = vmatpush1.xpose.msra.mxu0 0.0
    %1024 = vmatprep.subr.mxu0 0.0
    %1025 = vmatpush1.xpose.msra.mxu0 0.0
    %1026 = vmatprep.subr.mxu0 0.0
    %1027 = vmatpush1.xpose.msra.mxu0 0.0
    %1028 = vmatprep.subr.mxu0 0.0
    %1029 = vmatpush1.xpose.msra.mxu0 0.0
    %1030 = vmatprep.subr.mxu0 0.0
    %1031 = vmatpush1.xpose.msra.mxu0 0.0
    %1032 = vmatprep.subr.mxu0 0.0
    %1033 = vmatpush1.xpose.msra.mxu0 0.0
    %1034 = vmatprep.subr.mxu0 0.0
    %1035 = vmatpush1.xpose.msra.mxu0 0.0
    %1036 = vmatprep.subr.mxu0 0.0
    %1037 = vmatpush1.xpose.msra.mxu0 0.0
    %1038 = vmatprep.subr.mxu0 0.0
    %1039 = vmatpush1.xpose.msra.mxu0 0.0
    %1040 = vmatprep.subr.mxu0 0.0
    %1041 = vmatpush1.xpose.msra.mxu0 0.0
    %1042 = vmatprep.subr.mxu0 0.0
    %1043 = vmatpush1.xpose.msra.mxu0 0.0
    %1044 = vmatprep.subr.mxu0 0.0
    %1045 = vmatpush1.xpose.msra.mxu0 0.0
    %1046 = vmatprep.subr.mxu0 0.0
    %1047 = vmatpush1.xpose.msra.mxu0 0.0
    %1048 = vmatprep.subr.mxu0 0.0
    %1049 = vmatpush1.xpose.msra.mxu0 0.0
    %1050 = vmatprep.subr.mxu0 0.0
    %1051 = vmatpush1.xpose.msra.mxu0 0.0
    %1052 = vmatprep.subr.mxu0 0.0
    %1053 = vmatpush1.xpose.msra.mxu0 0.0
    %1054 = vmatprep.subr.mxu0 0.0
    %1055 = vmatpush1.xpose.msra.mxu0 0.0
    %1056 = vmatprep.subr.mxu0 0.0
    %1057 = vmatpush1.xpose.msra.mxu0 0.0
    %1058 = vmatprep.subr.mxu0 0.0
    %1059 = vmatpush1.xpose.msra.mxu0 0.0
    %1060 = vmatprep.subr.mxu0 0.0
    %1061 = vmatpush1.xpose.msra.mxu0 0.0
    %1062 = vmatprep.mubr.f32.mxu0 0.0
    %1063 = vmatmul.mubr.f32.gmra.mrb[0].mxu0 %v987
    %v1064 = vpop.f32.mrb[0].mxu0
    %v1065 = vadd.f32 %v20, %v1064
    %v1066 = vpop.f32.mrb[0].mxu0
    %1067 = vmatprep.mubr.f32.mxu0 0.0
    %1068 = vmatmul.mubr.f32.gmra.mrb[0].mxu0 %v990
    %v1069 = vpop.f32.mrb[0].mxu0
    %v1070 = vadd.f32 %v21, %v1069
    %v1071 = vpop.f32.mrb[0].mxu0
    %1072 = vdwg.mxu0
    %v1074 = vsel %vm985, %v193, 0
    %v1077 = vsel %vm985, %v198, 0
    %v1080 = vsel %vm985, %v510, 0
    %v1083 = vsel %vm985, %v515, 0
    %1085 = vmatprep.subr.mxu0 0.0
    %1086 = vmatpush1.xpose.msra.mxu0 %v1080
    %1087 = vmatprep.subr.mxu0 0.0
    %1088 = vmatpush1.xpose.msra.mxu0 %v1083
    %1089 = vmatprep.subr.mxu0 0.0
    %1090 = vmatpush1.xpose.msra.mxu0 0.0
    %1091 = vmatprep.subr.mxu0 0.0
    %1092 = vmatpush1.xpose.msra.mxu0 0.0
    %1093 = vmatprep.subr.mxu0 0.0
    %1094 = vmatpush1.xpose.msra.mxu0 0.0
    %1095 = vmatprep.subr.mxu0 0.0
    %1096 = vmatpush1.xpose.msra.mxu0 0.0
    %1097 = vmatprep.subr.mxu0 0.0
    %1098 = vmatpush1.xpose.msra.mxu0 0.0
    %1099 = vmatprep.subr.mxu0 0.0
    %1100 = vmatpush1.xpose.msra.mxu0 0.0
    %1101 = vmatprep.subr.mxu0 0.0
    %1102 = vmatpush1.xpose.msra.mxu0 0.0
    %1103 = vmatprep.subr.mxu0 0.0
    %1104 = vmatpush1.xpose.msra.mxu0 0.0
    %1105 = vmatprep.subr.mxu0 0.0
    %1106 = vmatpush1.xpose.msra.mxu0 0.0
    %1107 = vmatprep.subr.mxu0 0.0
    %1108 = vmatpush1.xpose.msra.mxu0 0.0
    %1109 = vmatprep.subr.mxu0 0.0
    %1110 = vmatpush1.xpose.msra.mxu0 0.0
    %1111 = vmatprep.subr.mxu0 0.0
    %1112 = vmatpush1.xpose.msra.mxu0 0.0
    %1113 = vmatprep.subr.mxu0 0.0
    %1114 = vmatpush1.xpose.msra.mxu0 0.0
    %1115 = vmatprep.subr.mxu0 0.0
    %1116 = vmatpush1.xpose.msra.mxu0 0.0
    %1117 = vmatprep.subr.mxu0 0.0
    %1118 = vmatpush1.xpose.msra.mxu0 0.0
    %1119 = vmatprep.subr.mxu0 0.0
    %1120 = vmatpush1.xpose.msra.mxu0 0.0
    %1121 = vmatprep.subr.mxu0 0.0
    %1122 = vmatpush1.xpose.msra.mxu0 0.0
    %1123 = vmatprep.subr.mxu0 0.0
    %1124 = vmatpush1.xpose.msra.mxu0 0.0
    %1125 = vmatprep.subr.mxu0 0.0
    %1126 = vmatpush1.xpose.msra.mxu0 0.0
    %1127 = vmatprep.subr.mxu0 0.0
    %1128 = vmatpush1.xpose.msra.mxu0 0.0
    %1129 = vmatprep.subr.mxu0 0.0
    %1130 = vmatpush1.xpose.msra.mxu0 0.0
    %1131 = vmatprep.subr.mxu0 0.0
    %1132 = vmatpush1.xpose.msra.mxu0 0.0
    %1133 = vmatprep.subr.mxu0 0.0
    %1134 = vmatpush1.xpose.msra.mxu0 0.0
    %1135 = vmatprep.subr.mxu0 0.0
    %1136 = vmatpush1.xpose.msra.mxu0 0.0
    %1137 = vmatprep.subr.mxu0 0.0
    %1138 = vmatpush1.xpose.msra.mxu0 0.0
    %1139 = vmatprep.subr.mxu0 0.0
    %1140 = vmatpush1.xpose.msra.mxu0 0.0
    %1141 = vmatprep.subr.mxu0 0.0
    %1142 = vmatpush1.xpose.msra.mxu0 0.0
    %1143 = vmatprep.subr.mxu0 0.0
    %1144 = vmatpush1.xpose.msra.mxu0 0.0
    %1145 = vmatprep.subr.mxu0 0.0
    %1146 = vmatpush1.xpose.msra.mxu0 0.0
    %1147 = vmatprep.subr.mxu0 0.0
    %1148 = vmatpush1.xpose.msra.mxu0 0.0
    %1149 = vmatprep.mubr.f32.mxu0 0.0
    %1150 = vmatmul.mubr.f32.gmra.mrb[0].mxu0 %v1074
    %v1151 = vpop.f32.mrb[0].mxu0
    %v1152 = vadd.f32 %v22, %v1151
    %v1153 = vpop.f32.mrb[0].mxu0
    %1154 = vmatprep.mubr.f32.mxu0 0.0
    %1155 = vmatmul.mubr.f32.gmra.mrb[0].mxu0 %v1077
    %v1156 = vpop.f32.mrb[0].mxu0
    %v1157 = vadd.f32 %v23, %v1156
    %v1158 = vpop.f32.mrb[0].mxu0
    %1159 = vdwg.mxu0
    %v1161 = vsel %vm985, %v268, 0
    %v1164 = vsel %vm985, %v273, 0
    %v1167 = vsel %vm985, %v585, 0
    %v1170 = vsel %vm985, %v590, 0
    %1172 = vmatprep.subr.mxu0 0.0
    %1173 = vmatpush1.xpose.msra.mxu0 %v1167
    %1174 = vmatprep.subr.mxu0 0.0
    %1175 = vmatpush1.xpose.msra.mxu0 %v1170
    %1176 = vmatprep.subr.mxu0 0.0
    %1177 = vmatpush1.xpose.msra.mxu0 0.0
    %1178 = vmatprep.subr.mxu0 0.0
    %1179 = vmatpush1.xpose.msra.mxu0 0.0
    %1180 = vmatprep.subr.mxu0 0.0
    %1181 = vmatpush1.xpose.msra.mxu0 0.0
    %1182 = vmatprep.subr.mxu0 0.0
    %1183 = vmatpush1.xpose.msra.mxu0 0.0
    %1184 = vmatprep.subr.mxu0 0.0
    %1185 = vmatpush1.xpose.msra.mxu0 0.0
    %1186 = vmatprep.subr.mxu0 0.0
    %1187 = vmatpush1.xpose.msra.mxu0 0.0
    %1188 = vmatprep.subr.mxu0 0.0
    %1189 = vmatpush1.xpose.msra.mxu0 0.0
    %1190 = vmatprep.subr.mxu0 0.0
    %1191 = vmatpush1.xpose.msra.mxu0 0.0
    %1192 = vmatprep.subr.mxu0 0.0
    %1193 = vmatpush1.xpose.msra.mxu0 0.0
    %1194 = vmatprep.subr.mxu0 0.0
    %1195 = vmatpush1.xpose.msra.mxu0 0.0
    %1196 = vmatprep.subr.mxu0 0.0
    %1197 = vmatpush1.xpose.msra.mxu0 0.0
    %1198 = vmatprep.subr.mxu0 0.0
    %1199 = vmatpush1.xpose.msra.mxu0 0.0
    %1200 = vmatprep.subr.mxu0 0.0
    %1201 = vmatpush1.xpose.msra.mxu0 0.0
    %1202 = vmatprep.subr.mxu0 0.0
    %1203 = vmatpush1.xpose.msra.mxu0 0.0
    %1204 = vmatprep.subr.mxu0 0.0
    %1205 = vmatpush1.xpose.msra.mxu0 0.0
    %1206 = vmatprep.subr.mxu0 0.0
    %1207 = vmatpush1.xpose.msra.mxu0 0.0
    %1208 = vmatprep.subr.mxu0 0.0
    %1209 = vmatpush1.xpose.msra.mxu0 0.0
    %1210 = vmatprep.subr.mxu0 0.0
    %1211 = vmatpush1.xpose.msra.mxu0 0.0
    %1212 = vmatprep.subr.mxu0 0.0
    %1213 = vmatpush1.xpose.msra.mxu0 0.0
    %1214 = vmatprep.subr.mxu0 0.0
    %1215 = vmatpush1.xpose.msra.mxu0 0.0
    %1216 = vmatprep.subr.mxu0 0.0
    %1217 = vmatpush1.xpose.msra.mxu0 0.0
    %1218 = vmatprep.subr.mxu0 0.0
    %1219 = vmatpush1.xpose.msra.mxu0 0.0
    %1220 = vmatprep.subr.mxu0 0.0
    %1221 = vmatpush1.xpose.msra.mxu0 0.0
    %1222 = vmatprep.subr.mxu0 0.0
    %1223 = vmatpush1.xpose.msra.mxu0 0.0
    %1224 = vmatprep.subr.mxu0 0.0
    %1225 = vmatpush1.xpose.msra.mxu0 0.0
    %1226 = vmatprep.subr.mxu0 0.0
    %1227 = vmatpush1.xpose.msra.mxu0 0.0
    %1228 = vmatprep.subr.mxu0 0.0
    %1229 = vmatpush1.xpose.msra.mxu0 0.0
    %1230 = vmatprep.subr.mxu0 0.0
    %1231 = vmatpush1.xpose.msra.mxu0 0.0
    %1232 = vmatprep.subr.mxu0 0.0
    %1233 = vmatpush1.xpose.msra.mxu0 0.0
    %1234 = vmatprep.subr.mxu0 0.0
    %1235 = vmatpush1.xpose.msra.mxu0 0.0
    %1236 = vmatprep.mubr.f32.mxu0 0.0
    %1237 = vmatmul.mubr.f32.gmra.mrb[0].mxu0 %v1161
    %v1238 = vpop.f32.mrb[0].mxu0
    %v1239 = vadd.f32 %v24, %v1238
    %v1240 = vpop.f32.mrb[0].mxu0
    %1241 = vmatprep.mubr.f32.mxu0 0.0
    %1242 = vmatmul.mubr.f32.gmra.mrb[0].mxu0 %v1164
    %v1243 = vpop.f32.mrb[0].mxu0
    %v1244 = vadd.f32 %v25, %v1243
    %v1245 = vpop.f32.mrb[0].mxu0
    %1246 = vdwg.mxu0
    %v1248 = vsel %vm985, %v343, 0
    %v1251 = vsel %vm985, %v348, 0
    %v1254 = vsel %vm985, %v660, 0
    %v1257 = vsel %vm985, %v665, 0
    %1259 = vmatprep.subr.mxu0 0.0
    %1260 = vmatpush1.xpose.msra.mxu0 %v1254
    %1261 = vmatprep.subr.mxu0 0.0
    %1262 = vmatpush1.xpose.msra.mxu0 %v1257
    %1263 = vmatprep.subr.mxu0 0.0
    %1264 = vmatpush1.xpose.msra.mxu0 0.0
    %1265 = vmatprep.subr.mxu0 0.0
    %1266 = vmatpush1.xpose.msra.mxu0 0.0
    %1267 = vmatprep.subr.mxu0 0.0
    %1268 = vmatpush1.xpose.msra.mxu0 0.0
    %1269 = vmatprep.subr.mxu0 0.0
    %1270 = vmatpush1.xpose.msra.mxu0 0.0
    %1271 = vmatprep.subr.mxu0 0.0
    %1272 = vmatpush1.xpose.msra.mxu0 0.0
    %1273 = vmatprep.subr.mxu0 0.0
    %1274 = vmatpush1.xpose.msra.mxu0 0.0
    %1275 = vmatprep.subr.mxu0 0.0
    %1276 = vmatpush1.xpose.msra.mxu0 0.0
    %1277 = vmatprep.subr.mxu0 0.0
    %1278 = vmatpush1.xpose.msra.mxu0 0.0
    %1279 = vmatprep.subr.mxu0 0.0
    %1280 = vmatpush1.xpose.msra.mxu0 0.0
    %1281 = vmatprep.subr.mxu0 0.0
    %1282 = vmatpush1.xpose.msra.mxu0 0.0
    %1283 = vmatprep.subr.mxu0 0.0
    %1284 = vmatpush1.xpose.msra.mxu0 0.0
    %1285 = vmatprep.subr.mxu0 0.0
    %1286 = vmatpush1.xpose.msra.mxu0 0.0
    %1287 = vmatprep.subr.mxu0 0.0
    %1288 = vmatpush1.xpose.msra.mxu0 0.0
    %1289 = vmatprep.subr.mxu0 0.0
    %1290 = vmatpush1.xpose.msra.mxu0 0.0
    %1291 = vmatprep.subr.mxu0 0.0
    %1292 = vmatpush1.xpose.msra.mxu0 0.0
    %1293 = vmatprep.subr.mxu0 0.0
    %1294 = vmatpush1.xpose.msra.mxu0 0.0
    %1295 = vmatprep.subr.mxu0 0.0
    %1296 = vmatpush1.xpose.msra.mxu0 0.0
    %1297 = vmatprep.subr.mxu0 0.0
    %1298 = vmatpush1.xpose.msra.mxu0 0.0
    %1299 = vmatprep.subr.mxu0 0.0
    %1300 = vmatpush1.xpose.msra.mxu0 0.0
    %1301 = vmatprep.subr.mxu0 0.0
    %1302 = vmatpush1.xpose.msra.mxu0 0.0
    %1303 = vmatprep.subr.mxu0 0.0
    %1304 = vmatpush1.xpose.msra.mxu0 0.0
    %1305 = vmatprep.subr.mxu0 0.0
    %1306 = vmatpush1.xpose.msra.mxu0 0.0
    %1307 = vmatprep.subr.mxu0 0.0
    %1308 = vmatpush1.xpose.msra.mxu0 0.0
    %1309 = vmatprep.subr.mxu0 0.0
    %1310 = vmatpush1.xpose.msra.mxu0 0.0
    %1311 = vmatprep.subr.mxu0 0.0
    %1312 = vmatpush1.xpose.msra.mxu0 0.0
    %1313 = vmatprep.subr.mxu0 0.0
    %1314 = vmatpush1.xpose.msra.mxu0 0.0
    %1315 = vmatprep.subr.mxu0 0.0
    %1316 = vmatpush1.xpose.msra.mxu0 0.0
    %1317 = vmatprep.subr.mxu0 0.0
    %1318 = vmatpush1.xpose.msra.mxu0 0.0
    %1319 = vmatprep.subr.mxu0 0.0
    %1320 = vmatpush1.xpose.msra.mxu0 0.0
    %1321 = vmatprep.subr.mxu0 0.0
    %1322 = vmatpush1.xpose.msra.mxu0 0.0
    %1323 = vmatprep.mubr.f32.mxu0 0.0
    %1324 = vmatmul.mubr.f32.gmra.mrb[0].mxu0 %v1248
    %v1325 = vpop.f32.mrb[0].mxu0
    %v1326 = vadd.f32 %v26, %v1325
    %v1327 = vpop.f32.mrb[0].mxu0
    %1328 = vmatprep.mubr.f32.mxu0 0.0
    %1329 = vmatmul.mubr.f32.gmra.mrb[0].mxu0 %v1251
    %v1330 = vpop.f32.mrb[0].mxu0
    %v1331 = vadd.f32 %v27, %v1330
    %v1332 = vpop.f32.mrb[0].mxu0
    %1333 = vdwg.mxu0
    %vm1334 = vcmask 130048
    %v1335 = vsel %vm1334, %v1065, -inf
    %1336 = vmax.xlane.f32.xlu0 %v1335
    %v1337 = vpop.xlane.xlu0 %1336
    %v1338 = vsel %vm1334, %v1070, -inf
    %1339 = vmax.xlane.f32.xlu0 %v1338
    %v1340 = vpop.xlane.xlu0 %1339
    %v1341 = vsel %vm1334, %v1152, -inf
    %1342 = vmax.xlane.f32.xlu0 %v1341
    %v1343 = vpop.xlane.xlu0 %1342
    %v1344 = vsel %vm1334, %v1157, -inf
    %1345 = vmax.xlane.f32.xlu0 %v1344
    %v1346 = vpop.xlane.xlu0 %1345
    %v1347 = vsel %vm1334, %v1239, -inf
    %1348 = vmax.xlane.f32.xlu0 %v1347
    %v1349 = vpop.xlane.xlu0 %1348
    %v1350 = vsel %vm1334, %v1244, -inf
    %1351 = vmax.xlane.f32.xlu0 %v1350
    %v1352 = vpop.xlane.xlu0 %1351
    %v1353 = vsel %vm1334, %v1326, -inf
    %1354 = vmax.xlane.f32.xlu0 %v1353
    %v1355 = vpop.xlane.xlu0 %1354
    %v1356 = vsel %vm1334, %v1331, -inf
    %1357 = vmax.xlane.f32.xlu0 %v1356
    %v1358 = vpop.xlane.xlu0 %1357
    %v1359 = vsub.f32 %v1065, %v1337
    %v1360 = vsub.f32 %v1070, %v1340
    %v1361 = vsub.f32 %v1152, %v1343
    %v1362 = vsub.f32 %v1157, %v1346
    %v1363 = vsub.f32 %v1239, %v1349
    %v1364 = vsub.f32 %v1244, %v1352
    %v1365 = vsub.f32 %v1326, %v1355
    %v1366 = vsub.f32 %v1331, %v1358
    %v1367 = vmul.f32 %v1359, 1.442695
    %v1368 = vpow.pop %v1367
    %v1369 = vmul.f32 %v1360, 1.442695
    %v1370 = vpow.pop %v1369
    %v1371 = vmul.f32 %v1361, 1.442695
    %v1372 = vpow.pop %v1371
    %v1373 = vmul.f32 %v1362, 1.442695
    %v1374 = vpow.pop %v1373
    %v1375 = vmul.f32 %v1363, 1.442695
    %v1376 = vpow.pop %v1375
    %v1377 = vmul.f32 %v1364, 1.442695
    %v1378 = vpow.pop %v1377
    %v1379 = vmul.f32 %v1365, 1.442695
    %v1380 = vpow.pop %v1379
    %v1381 = vmul.f32 %v1366, 1.442695
    %v1382 = vpow.pop %v1381
    %v1383 = vsel %vm1334, %v1368, 0.0
    %1384 = vadd.xlane.f32.xlu0 %v1383
    %v1385 = vpop.xlane.xlu0 %1384
    %v1386 = vsel %vm1334, %v1370, 0.0
    %1387 = vadd.xlane.f32.xlu0 %v1386
    %v1388 = vpop.xlane.xlu0 %1387
    %v1389 = vsel %vm1334, %v1372, 0.0
    %1390 = vadd.xlane.f32.xlu0 %v1389
    %v1391 = vpop.xlane.xlu0 %1390
    %v1392 = vsel %vm1334, %v1374, 0.0
    %1393 = vadd.xlane.f32.xlu0 %v1392
    %v1394 = vpop.xlane.xlu0 %1393
    %v1395 = vsel %vm1334, %v1376, 0.0
    %1396 = vadd.xlane.f32.xlu0 %v1395
    %v1397 = vpop.xlane.xlu0 %1396
    %v1398 = vsel %vm1334, %v1378, 0.0
    %1399 = vadd.xlane.f32.xlu0 %v1398
    %v1400 = vpop.xlane.xlu0 %1399
    %v1401 = vsel %vm1334, %v1380, 0.0
    %1402 = vadd.xlane.f32.xlu0 %v1401
    %v1403 = vpop.xlane.xlu0 %1402
    %v1404 = vsel %vm1334, %v1382, 0.0
    %1405 = vadd.xlane.f32.xlu0 %v1404
    %v1406 = vpop.xlane.xlu0 %1405
    %v1407 = vrcp.pop %v1385
    %v1408 = vrcp.pop %v1388
    %v1409 = vrcp.pop %v1391
    %v1410 = vrcp.pop %v1394
    %v1411 = vrcp.pop %v1397
    %v1412 = vrcp.pop %v1400
    %v1413 = vrcp.pop %v1403
    %v1414 = vrcp.pop %v1406
    %v1415 = vmul.f32 %v1368, %v1407
    %v1416 = vmul.f32 %v1370, %v1408
    %v1417 = vmul.f32 %v1372, %v1409
    %v1418 = vmul.f32 %v1374, %v1410
    %v1419 = vmul.f32 %v1376, %v1411
    %v1420 = vmul.f32 %v1378, %v1412
    %v1421 = vmul.f32 %v1380, %v1413
    %v1422 = vmul.f32 %v1382, %v1414
    %v1424 = vsel %vm1334, %v1415, 0
    %v1427 = vsel %vm1334, %v1416, 0
    %1429 = vmatprep.subr.mxu0 0.0
    %1430 = vmatpush1.msra.mxu0 %v752
    %1431 = vmatprep.subr.mxu0 0.0
    %1432 = vmatpush1.msra.mxu0 %v757
    %1433 = vmatprep.subr.mxu0 0.0
    %1434 = vmatpush1.msra.mxu0 0.0
    %1435 = vmatprep.subr.mxu0 0.0
    %1436 = vmatpush1.msra.mxu0 0.0
    %1437 = vmatprep.subr.mxu0 0.0
    %1438 = vmatpush1.msra.mxu0 0.0
    %1439 = vmatprep.subr.mxu0 0.0
    %1440 = vmatpush1.msra.mxu0 0.0
    %1441 = vmatprep.subr.mxu0 0.0
    %1442 = vmatpush1.msra.mxu0 0.0
    %1443 = vmatprep.subr.mxu0 0.0
    %1444 = vmatpush1.msra.mxu0 0.0
    %1445 = vmatprep.subr.mxu0 0.0
    %1446 = vmatpush1.msra.mxu0 0.0
    %1447 = vmatprep.subr.mxu0 0.0
    %1448 = vmatpush1.msra.mxu0 0.0
    %1449 = vmatprep.subr.mxu0 0.0
    %1450 = vmatpush1.msra.mxu0 0.0
    %1451 = vmatprep.subr.mxu0 0.0
    %1452 = vmatpush1.msra.mxu0 0.0
    %1453 = vmatprep.subr.mxu0 0.0
    %1454 = vmatpush1.msra.mxu0 0.0
    %1455 = vmatprep.subr.mxu0 0.0
    %1456 = vmatpush1.msra.mxu0 0.0
    %1457 = vmatprep.subr.mxu0 0.0
    %1458 = vmatpush1.msra.mxu0 0.0
    %1459 = vmatprep.subr.mxu0 0.0
    %1460 = vmatpush1.msra.mxu0 0.0
    %1461 = vmatprep.subr.mxu0 0.0
    %1462 = vmatpush1.msra.mxu0 0.0
    %1463 = vmatprep.subr.mxu0 0.0
    %1464 = vmatpush1.msra.mxu0 0.0
    %1465 = vmatprep.subr.mxu0 0.0
    %1466 = vmatpush1.msra.mxu0 0.0
    %1467 = vmatprep.subr.mxu0 0.0
    %1468 = vmatpush1.msra.mxu0 0.0
    %1469 = vmatprep.subr.mxu0 0.0
    %1470 = vmatpush1.msra.mxu0 0.0
    %1471 = vmatprep.subr.mxu0 0.0
    %1472 = vmatpush1.msra.mxu0 0.0
    %1473 = vmatprep.subr.mxu0 0.0
    %1474 = vmatpush1.msra.mxu0 0.0
    %1475 = vmatprep.subr.mxu0 0.0
    %1476 = vmatpush1.msra.mxu0 0.0
    %1477 = vmatprep.subr.mxu0 0.0
    %1478 = vmatpush1.msra.mxu0 0.0
    %1479 = vmatprep.subr.mxu0 0.0
    %1480 = vmatpush1.msra.mxu0 0.0
    %1481 = vmatprep.subr.mxu0 0.0
    %1482 = vmatpush1.msra.mxu0 0.0
    %1483 = vmatprep.subr.mxu0 0.0
    %1484 = vmatpush1.msra.mxu0 0.0
    %1485 = vmatprep.subr.mxu0 0.0
    %1486 = vmatpush1.msra.mxu0 0.0
    %1487 = vmatprep.subr.mxu0 0.0
    %1488 = vmatpush1.msra.mxu0 0.0
    %1489 = vmatprep.subr.mxu0 0.0
    %1490 = vmatpush1.msra.mxu0 0.0
    %1491 = vmatprep.subr.mxu0 0.0
    %1492 = vmatpush1.msra.mxu0 0.0
    %1493 = vmatprep.mubr.f32.mxu0 0.0
    %1494 = vmatmul.mubr.f32.gmra.mrb[0].mxu0 %v1424
    %v1495 = vpop.f32.mrb[0].mxu0
    %v1496 = vadd.f32 0.0, %v1495
    %v1497 = vpop.f32.mrb[0].mxu0
    %1498 = vmatprep.mubr.f32.mxu0 0.0
    %1499 = vmatmul.mubr.f32.gmra.mrb[0].mxu0 %v1427
    %v1500 = vpop.f32.mrb[0].mxu0
    %v1501 = vadd.f32 0.0, %v1500
    %v1502 = vpop.f32.mrb[0].mxu0
    %1503 = vdwg.mxu0
    %v1505 = vsel %vm1334, %v1417, 0
    %v1508 = vsel %vm1334, %v1418, 0
    %1510 = vmatprep.subr.mxu0 0.0
    %1511 = vmatpush1.msra.mxu0 %v827
    %1512 = vmatprep.subr.mxu0 0.0
    %1513 = vmatpush1.msra.mxu0 %v832
    %1514 = vmatprep.subr.mxu0 0.0
    %1515 = vmatpush1.msra.mxu0 0.0
    %1516 = vmatprep.subr.mxu0 0.0
    %1517 = vmatpush1.msra.mxu0 0.0
    %1518 = vmatprep.subr.mxu0 0.0
    %1519 = vmatpush1.msra.mxu0 0.0
    %1520 = vmatprep.subr.mxu0 0.0
    %1521 = vmatpush1.msra.mxu0 0.0
    %1522 = vmatprep.subr.mxu0 0.0
    %1523 = vmatpush1.msra.mxu0 0.0
    %1524 = vmatprep.subr.mxu0 0.0
    %1525 = vmatpush1.msra.mxu0 0.0
    %1526 = vmatprep.subr.mxu0 0.0
    %1527 = vmatpush1.msra.mxu0 0.0
    %1528 = vmatprep.subr.mxu0 0.0
    %1529 = vmatpush1.msra.mxu0 0.0
    %1530 = vmatprep.subr.mxu0 0.0
    %1531 = vmatpush1.msra.mxu0 0.0
    %1532 = vmatprep.subr.mxu0 0.0
    %1533 = vmatpush1.msra.mxu0 0.0
    %1534 = vmatprep.subr.mxu0 0.0
    %1535 = vmatpush1.msra.mxu0 0.0
    %1536 = vmatprep.subr.mxu0 0.0
    %1537 = vmatpush1.msra.mxu0 0.0
    %1538 = vmatprep.subr.mxu0 0.0
    %1539 = vmatpush1.msra.mxu0 0.0
    %1540 = vmatprep.subr.mxu0 0.0
    %1541 = vmatpush1.msra.mxu0 0.0
    %1542 = vmatprep.subr.mxu0 0.0
    %1543 = vmatpush1.msra.mxu0 0.0
    %1544 = vmatprep.subr.mxu0 0.0
    %1545 = vmatpush1.msra.mxu0 0.0
    %1546 = vmatprep.subr.mxu0 0.0
    %1547 = vmatpush1.msra.mxu0 0.0
    %1548 = vmatprep.subr.mxu0 0.0
    %1549 = vmatpush1.msra.mxu0 0.0
    %1550 = vmatprep.subr.mxu0 0.0
    %1551 = vmatpush1.msra.mxu0 0.0
    %1552 = vmatprep.subr.mxu0 0.0
    %1553 = vmatpush1.msra.mxu0 0.0
    %1554 = vmatprep.subr.mxu0 0.0
    %1555 = vmatpush1.msra.mxu0 0.0
    %1556 = vmatprep.subr.mxu0 0.0
    %1557 = vmatpush1.msra.mxu0 0.0
    %1558 = vmatprep.subr.mxu0 0.0
    %1559 = vmatpush1.msra.mxu0 0.0
    %1560 = vmatprep.subr.mxu0 0.0
    %1561 = vmatpush1.msra.mxu0 0.0
    %1562 = vmatprep.subr.mxu0 0.0
    %1563 = vmatpush1.msra.mxu0 0.0
    %1564 = vmatprep.subr.mxu0 0.0
    %1565 = vmatpush1.msra.mxu0 0.0
    %1566 = vmatprep.subr.mxu0 0.0
    %1567 = vmatpush1.msra.mxu0 0.0
    %1568 = vmatprep.subr.mxu0 0.0
    %1569 = vmatpush1.msra.mxu0 0.0
    %1570 = vmatprep.subr.mxu0 0.0
    %1571 = vmatpush1.msra.mxu0 0.0
    %1572 = vmatprep.subr.mxu0 0.0
    %1573 = vmatpush1.msra.mxu0 0.0
    %1574 = vmatprep.mubr.f32.mxu0 0.0
    %1575 = vmatmul.mubr.f32.gmra.mrb[0].mxu0 %v1505
    %v1576 = vpop.f32.mrb[0].mxu0
    %v1577 = vadd.f32 0.0, %v1576
    %v1578 = vpop.f32.mrb[0].mxu0
    %1579 = vmatprep.mubr.f32.mxu0 0.0
    %1580 = vmatmul.mubr.f32.gmra.mrb[0].mxu0 %v1508
    %v1581 = vpop.f32.mrb[0].mxu0
    %v1582 = vadd.f32 0.0, %v1581
    %v1583 = vpop.f32.mrb[0].mxu0
    %1584 = vdwg.mxu0
    %v1586 = vsel %vm1334, %v1419, 0
    %v1589 = vsel %vm1334, %v1420, 0
    %1591 = vmatprep.subr.mxu0 0.0
    %1592 = vmatpush1.msra.mxu0 %v902
    %1593 = vmatprep.subr.mxu0 0.0
    %1594 = vmatpush1.msra.mxu0 %v907
    %1595 = vmatprep.subr.mxu0 0.0
    %1596 = vmatpush1.msra.mxu0 0.0
    %1597 = vmatprep.subr.mxu0 0.0
    %1598 = vmatpush1.msra.mxu0 0.0
    %1599 = vmatprep.subr.mxu0 0.0
    %1600 = vmatpush1.msra.mxu0 0.0
    %1601 = vmatprep.subr.mxu0 0.0
    %1602 = vmatpush1.msra.mxu0 0.0
    %1603 = vmatprep.subr.mxu0 0.0
    %1604 = vmatpush1.msra.mxu0 0.0
    %1605 = vmatprep.subr.mxu0 0.0
    %1606 = vmatpush1.msra.mxu0 0.0
    %1607 = vmatprep.subr.mxu0 0.0
    %1608 = vmatpush1.msra.mxu0 0.0
    %1609 = vmatprep.subr.mxu0 0.0
    %1610 = vmatpush1.msra.mxu0 0.0
    %1611 = vmatprep.subr.mxu0 0.0
    %1612 = vmatpush1.msra.mxu0 0.0
    %1613 = vmatprep.subr.mxu0 0.0
    %1614 = vmatpush1.msra.mxu0 0.0
    %1615 = vmatprep.subr.mxu0 0.0
    %1616 = vmatpush1.msra.mxu0 0.0
    %1617 = vmatprep.subr.mxu0 0.0
    %1618 = vmatpush1.msra.mxu0 0.0
    %1619 = vmatprep.subr.mxu0 0.0
    %1620 = vmatpush1.msra.mxu0 0.0
    %1621 = vmatprep.subr.mxu0 0.0
    %1622 = vmatpush1.msra.mxu0 0.0
    %1623 = vmatprep.subr.mxu0 0.0
    %1624 = vmatpush1.msra.mxu0 0.0
    %1625 = vmatprep.subr.mxu0 0.0
    %1626 = vmatpush1.msra.mxu0 0.0
    %1627 = vmatprep.subr.mxu0 0.0
    %1628 = vmatpush1.msra.mxu0 0.0
    %1629 = vmatprep.subr.mxu0 0.0
    %1630 = vmatpush1.msra.mxu0 0.0
    %1631 = vmatprep.subr.mxu0 0.0
    %1632 = vmatpush1.msra.mxu0 0.0
    %1633 = vmatprep.subr.mxu0 0.0
    %1634 = vmatpush1.msra.mxu0 0.0
    %1635 = vmatprep.subr.mxu0 0.0
    %1636 = vmatpush1.msra.mxu0 0.0
    %1637 = vmatprep.subr.mxu0 0.0
    %1638 = vmatpush1.msra.mxu0 0.0
    %1639 = vmatprep.subr.mxu0 0.0
    %1640 = vmatpush1.msra.mxu0 0.0
    %1641 = vmatprep.subr.mxu0 0.0
    %1642 = vmatpush1.msra.mxu0 0.0
    %1643 = vmatprep.subr.mxu0 0.0
    %1644 = vmatpush1.msra.mxu0 0.0
    %1645 = vmatprep.subr.mxu0 0.0
    %1646 = vmatpush1.msra.mxu0 0.0
    %1647 = vmatprep.subr.mxu0 0.0
    %1648 = vmatpush1.msra.mxu0 0.0
    %1649 = vmatprep.subr.mxu0 0.0
    %1650 = vmatpush1.msra.mxu0 0.0
    %1651 = vmatprep.subr.mxu0 0.0
    %1652 = vmatpush1.msra.mxu0 0.0
    %1653 = vmatprep.subr.mxu0 0.0
    %1654 = vmatpush1.msra.mxu0 0.0
    %1655 = vmatprep.mubr.f32.mxu0 0.0
    %1656 = vmatmul.mubr.f32.gmra.mrb[0].mxu0 %v1586
    %v1657 = vpop.f32.mrb[0].mxu0
    %v1658 = vadd.f32 0.0, %v1657
    %v1659 = vpop.f32.mrb[0].mxu0
    %1660 = vmatprep.mubr.f32.mxu0 0.0
    %1661 = vmatmul.mubr.f32.gmra.mrb[0].mxu0 %v1589
    %v1662 = vpop.f32.mrb[0].mxu0
    %v1663 = vadd.f32 0.0, %v1662
    %v1664 = vpop.f32.mrb[0].mxu0
    %1665 = vdwg.mxu0
    %v1667 = vsel %vm1334, %v1421, 0
    %v1670 = vsel %vm1334, %v1422, 0
    %1672 = vmatprep.subr.mxu0 0.0
    %1673 = vmatpush1.msra.mxu0 %v977
    %1674 = vmatprep.subr.mxu0 0.0
    %1675 = vmatpush1.msra.mxu0 %v982
    %1676 = vmatprep.subr.mxu0 0.0
    %1677 = vmatpush1.msra.mxu0 0.0
    %1678 = vmatprep.subr.mxu0 0.0
    %1679 = vmatpush1.msra.mxu0 0.0
    %1680 = vmatprep.subr.mxu0 0.0
    %1681 = vmatpush1.msra.mxu0 0.0
    %1682 = vmatprep.subr.mxu0 0.0
    %1683 = vmatpush1.msra.mxu0 0.0
    %1684 = vmatprep.subr.mxu0 0.0
    %1685 = vmatpush1.msra.mxu0 0.0
    %1686 = vmatprep.subr.mxu0 0.0
    %1687 = vmatpush1.msra.mxu0 0.0
    %1688 = vmatprep.subr.mxu0 0.0
    %1689 = vmatpush1.msra.mxu0 0.0
    %1690 = vmatprep.subr.mxu0 0.0
    %1691 = vmatpush1.msra.mxu0 0.0
    %1692 = vmatprep.subr.mxu0 0.0
    %1693 = vmatpush1.msra.mxu0 0.0
    %1694 = vmatprep.subr.mxu0 0.0
    %1695 = vmatpush1.msra.mxu0 0.0
    %1696 = vmatprep.subr.mxu0 0.0
    %1697 = vmatpush1.msra.mxu0 0.0
    %1698 = vmatprep.subr.mxu0 0.0
    %1699 = vmatpush1.msra.mxu0 0.0
    %1700 = vmatprep.subr.mxu0 0.0
    %1701 = vmatpush1.msra.mxu0 0.0
    %1702 = vmatprep.subr.mxu0 0.0
    %1703 = vmatpush1.msra.mxu0 0.0
    %1704 = vmatprep.subr.mxu0 0.0
    %1705 = vmatpush1.msra.mxu0 0.0
    %1706 = vmatprep.subr.mxu0 0.0
    %1707 = vmatpush1.msra.mxu0 0.0
    %1708 = vmatprep.subr.mxu0 0.0
    %1709 = vmatpush1.msra.mxu0 0.0
    %1710 = vmatprep.subr.mxu0 0.0
    %1711 = vmatpush1.msra.mxu0 0.0
    %1712 = vmatprep.subr.mxu0 0.0
    %1713 = vmatpush1.msra.mxu0 0.0
    %1714 = vmatprep.subr.mxu0 0.0
    %1715 = vmatpush1.msra.mxu0 0.0
    %1716 = vmatprep.subr.mxu0 0.0
    %1717 = vmatpush1.msra.mxu0 0.0
    %1718 = vmatprep.subr.mxu0 0.0
    %1719 = vmatpush1.msra.mxu0 0.0
    %1720 = vmatprep.subr.mxu0 0.0
    %1721 = vmatpush1.msra.mxu0 0.0
    %1722 = vmatprep.subr.mxu0 0.0
    %1723 = vmatpush1.msra.mxu0 0.0
    %1724 = vmatprep.subr.mxu0 0.0
    %1725 = vmatpush1.msra.mxu0 0.0
    %1726 = vmatprep.subr.mxu0 0.0
    %1727 = vmatpush1.msra.mxu0 0.0
    %1728 = vmatprep.subr.mxu0 0.0
    %1729 = vmatpush1.msra.mxu0 0.0
    %1730 = vmatprep.subr.mxu0 0.0
    %1731 = vmatpush1.msra.mxu0 0.0
    %1732 = vmatprep.subr.mxu0 0.0
    %1733 = vmatpush1.msra.mxu0 0.0
    %1734 = vmatprep.subr.mxu0 0.0
    %1735 = vmatpush1.msra.mxu0 0.0
    %1736 = vmatprep.mubr.f32.mxu0 0.0
    %1737 = vmatmul.mubr.f32.gmra.mrb[0].mxu0 %v1667
    %v1738 = vpop.f32.mrb[0].mxu0
    %v1739 = vadd.f32 0.0, %v1738
    %v1740 = vpop.f32.mrb[0].mxu0
    %1741 = vmatprep.mubr.f32.mxu0 0.0
    %1742 = vmatmul.mubr.f32.gmra.mrb[0].mxu0 %v1670
    %v1743 = vpop.f32.mrb[0].mxu0
    %v1744 = vadd.f32 0.0, %v1743
    %v1745 = vpop.f32.mrb[0].mxu0
    %1746 = vdwg.mxu0
    %v1747 = vld [vmem:[%s3] sm:$0xff]
    %v1748 = vld [vmem:[%s3 + $0x8] sm:$0xff]
    %v1749 = vld [vmem:[%s3 + $0x10] sm:$0xff]
    %v1750 = vld [vmem:[%s3 + $0x18] sm:$0xff]
    %v1752 = vsel %vm985, %v1496, 0
    %v1755 = vsel %vm985, %v1501, 0
    %1757 = vmatprep.subr.mxu0 0.0
    %1758 = vmatpush1.msra.mxu0 %v1747
    %1759 = vmatprep.subr.mxu0 0.0
    %1760 = vmatpush1.msra.mxu0 0.0
    %1761 = vmatprep.subr.mxu0 0.0
    %1762 = vmatpush1.msra.mxu0 0.0
    %1763 = vmatprep.subr.mxu0 0.0
    %1764 = vmatpush1.msra.mxu0 0.0
    %1765 = vmatprep.subr.mxu0 0.0
    %1766 = vmatpush1.msra.mxu0 0.0
    %1767 = vmatprep.subr.mxu0 0.0
    %1768 = vmatpush1.msra.mxu0 0.0
    %1769 = vmatprep.subr.mxu0 0.0
    %1770 = vmatpush1.msra.mxu0 0.0
    %1771 = vmatprep.subr.mxu0 0.0
    %1772 = vmatpush1.msra.mxu0 0.0
    %1773 = vmatprep.subr.mxu0 0.0
    %1774 = vmatpush1.msra.mxu0 0.0
    %1775 = vmatprep.subr.mxu0 0.0
    %1776 = vmatpush1.msra.mxu0 0.0
    %1777 = vmatprep.subr.mxu0 0.0
    %1778 = vmatpush1.msra.mxu0 0.0
    %1779 = vmatprep.subr.mxu0 0.0
    %1780 = vmatpush1.msra.mxu0 0.0
    %1781 = vmatprep.subr.mxu0 0.0
    %1782 = vmatpush1.msra.mxu0 0.0
    %1783 = vmatprep.subr.mxu0 0.0
    %1784 = vmatpush1.msra.mxu0 0.0
    %1785 = vmatprep.subr.mxu0 0.0
    %1786 = vmatpush1.msra.mxu0 0.0
    %1787 = vmatprep.subr.mxu0 0.0
    %1788 = vmatpush1.msra.mxu0 0.0
    %1789 = vmatprep.subr.mxu0 0.0
    %1790 = vmatpush1.msra.mxu0 0.0
    %1791 = vmatprep.subr.mxu0 0.0
    %1792 = vmatpush1.msra.mxu0 0.0
    %1793 = vmatprep.subr.mxu0 0.0
    %1794 = vmatpush1.msra.mxu0 0.0
    %1795 = vmatprep.subr.mxu0 0.0
    %1796 = vmatpush1.msra.mxu0 0.0
    %1797 = vmatprep.subr.mxu0 0.0
    %1798 = vmatpush1.msra.mxu0 0.0
    %1799 = vmatprep.subr.mxu0 0.0
    %1800 = vmatpush1.msra.mxu0 0.0
    %1801 = vmatprep.subr.mxu0 0.0
    %1802 = vmatpush1.msra.mxu0 0.0
    %1803 = vmatprep.subr.mxu0 0.0
    %1804 = vmatpush1.msra.mxu0 0.0
    %1805 = vmatprep.subr.mxu0 0.0
    %1806 = vmatpush1.msra.mxu0 0.0
    %1807 = vmatprep.subr.mxu0 0.0
    %1808 = vmatpush1.msra.mxu0 0.0
    %1809 = vmatprep.subr.mxu0 0.0
    %1810 = vmatpush1.msra.mxu0 0.0
    %1811 = vmatprep.subr.mxu0 0.0
    %1812 = vmatpush1.msra.mxu0 0.0
    %1813 = vmatprep.subr.mxu0 0.0
    %1814 = vmatpush1.msra.mxu0 0.0
    %1815 = vmatprep.subr.mxu0 0.0
    %1816 = vmatpush1.msra.mxu0 0.0
    %1817 = vmatprep.subr.mxu0 0.0
    %1818 = vmatpush1.msra.mxu0 0.0
    %1819 = vmatprep.subr.mxu0 0.0
    %1820 = vmatpush1.msra.mxu0 0.0
    %1821 = vmatprep.mubr.f32.mxu0 0.0
    %1822 = vmatmul.mubr.f32.gmra.mrb[0].mxu0 %v1752
    %v1823 = vpop.f32.mrb[0].mxu0
    %v1824 = vadd.f32 0.0, %v1823
    %v1825 = vpop.f32.mrb[0].mxu0
    %1826 = vmatprep.mubr.f32.mxu0 0.0
    %1827 = vmatmul.mubr.f32.gmra.mrb[0].mxu0 %v1755
    %v1828 = vpop.f32.mrb[0].mxu0
    %v1829 = vadd.f32 0.0, %v1828
    %v1830 = vpop.f32.mrb[0].mxu0
    %1831 = vdwg.mxu0
    %v1833 = vsel %vm985, %v1577, 0
    %v1836 = vsel %vm985, %v1582, 0
    %1838 = vmatprep.subr.mxu0 0.0
    %1839 = vmatpush1.msra.mxu0 %v1748
    %1840 = vmatprep.subr.mxu0 0.0
    %1841 = vmatpush1.msra.mxu0 0.0
    %1842 = vmatprep.subr.mxu0 0.0
    %1843 = vmatpush1.msra.mxu0 0.0
    %1844 = vmatprep.subr.mxu0 0.0
    %1845 = vmatpush1.msra.mxu0 0.0
    %1846 = vmatprep.subr.mxu0 0.0
    %1847 = vmatpush1.msra.mxu0 0.0
    %1848 = vmatprep.subr.mxu0 0.0
    %1849 = vmatpush1.msra.mxu0 0.0
    %1850 = vmatprep.subr.mxu0 0.0
    %1851 = vmatpush1.msra.mxu0 0.0
    %1852 = vmatprep.subr.mxu0 0.0
    %1853 = vmatpush1.msra.mxu0 0.0
    %1854 = vmatprep.subr.mxu0 0.0
    %1855 = vmatpush1.msra.mxu0 0.0
    %1856 = vmatprep.subr.mxu0 0.0
    %1857 = vmatpush1.msra.mxu0 0.0
    %1858 = vmatprep.subr.mxu0 0.0
    %1859 = vmatpush1.msra.mxu0 0.0
    %1860 = vmatprep.subr.mxu0 0.0
    %1861 = vmatpush1.msra.mxu0 0.0
    %1862 = vmatprep.subr.mxu0 0.0
    %1863 = vmatpush1.msra.mxu0 0.0
    %1864 = vmatprep.subr.mxu0 0.0
    %1865 = vmatpush1.msra.mxu0 0.0
    %1866 = vmatprep.subr.mxu0 0.0
    %1867 = vmatpush1.msra.mxu0 0.0
    %1868 = vmatprep.subr.mxu0 0.0
    %1869 = vmatpush1.msra.mxu0 0.0
    %1870 = vmatprep.subr.mxu0 0.0
    %1871 = vmatpush1.msra.mxu0 0.0
    %1872 = vmatprep.subr.mxu0 0.0
    %1873 = vmatpush1.msra.mxu0 0.0
    %1874 = vmatprep.subr.mxu0 0.0
    %1875 = vmatpush1.msra.mxu0 0.0
    %1876 = vmatprep.subr.mxu0 0.0
    %1877 = vmatpush1.msra.mxu0 0.0
    %1878 = vmatprep.subr.mxu0 0.0
    %1879 = vmatpush1.msra.mxu0 0.0
    %1880 = vmatprep.subr.mxu0 0.0
    %1881 = vmatpush1.msra.mxu0 0.0
    %1882 = vmatprep.subr.mxu0 0.0
    %1883 = vmatpush1.msra.mxu0 0.0
    %1884 = vmatprep.subr.mxu0 0.0
    %1885 = vmatpush1.msra.mxu0 0.0
    %1886 = vmatprep.subr.mxu0 0.0
    %1887 = vmatpush1.msra.mxu0 0.0
    %1888 = vmatprep.subr.mxu0 0.0
    %1889 = vmatpush1.msra.mxu0 0.0
    %1890 = vmatprep.subr.mxu0 0.0
    %1891 = vmatpush1.msra.mxu0 0.0
    %1892 = vmatprep.subr.mxu0 0.0
    %1893 = vmatpush1.msra.mxu0 0.0
    %1894 = vmatprep.subr.mxu0 0.0
    %1895 = vmatpush1.msra.mxu0 0.0
    %1896 = vmatprep.subr.mxu0 0.0
    %1897 = vmatpush1.msra.mxu0 0.0
    %1898 = vmatprep.subr.mxu0 0.0
    %1899 = vmatpush1.msra.mxu0 0.0
    %1900 = vmatprep.subr.mxu0 0.0
    %1901 = vmatpush1.msra.mxu0 0.0
    %1902 = vmatprep.mubr.f32.mxu0 0.0
    %1903 = vmatmul.mubr.f32.gmra.mrb[0].mxu0 %v1833
    %v1904 = vpop.f32.mrb[0].mxu0
    %v1905 = vadd.f32 0.0, %v1904
    %v1906 = vpop.f32.mrb[0].mxu0
    %1907 = vmatprep.mubr.f32.mxu0 0.0
    %1908 = vmatmul.mubr.f32.gmra.mrb[0].mxu0 %v1836
    %v1909 = vpop.f32.mrb[0].mxu0
    %v1910 = vadd.f32 0.0, %v1909
    %v1911 = vpop.f32.mrb[0].mxu0
    %1912 = vdwg.mxu0
    %v1914 = vsel %vm985, %v1658, 0
    %v1917 = vsel %vm985, %v1663, 0
    %1919 = vmatprep.subr.mxu0 0.0
    %1920 = vmatpush1.msra.mxu0 %v1749
    %1921 = vmatprep.subr.mxu0 0.0
    %1922 = vmatpush1.msra.mxu0 0.0
    %1923 = vmatprep.subr.mxu0 0.0
    %1924 = vmatpush1.msra.mxu0 0.0
    %1925 = vmatprep.subr.mxu0 0.0
    %1926 = vmatpush1.msra.mxu0 0.0
    %1927 = vmatprep.subr.mxu0 0.0
    %1928 = vmatpush1.msra.mxu0 0.0
    %1929 = vmatprep.subr.mxu0 0.0
    %1930 = vmatpush1.msra.mxu0 0.0
    %1931 = vmatprep.subr.mxu0 0.0
    %1932 = vmatpush1.msra.mxu0 0.0
    %1933 = vmatprep.subr.mxu0 0.0
    %1934 = vmatpush1.msra.mxu0 0.0
    %1935 = vmatprep.subr.mxu0 0.0
    %1936 = vmatpush1.msra.mxu0 0.0
    %1937 = vmatprep.subr.mxu0 0.0
    %1938 = vmatpush1.msra.mxu0 0.0
    %1939 = vmatprep.subr.mxu0 0.0
    %1940 = vmatpush1.msra.mxu0 0.0
    %1941 = vmatprep.subr.mxu0 0.0
    %1942 = vmatpush1.msra.mxu0 0.0
    %1943 = vmatprep.subr.mxu0 0.0
    %1944 = vmatpush1.msra.mxu0 0.0
    %1945 = vmatprep.subr.mxu0 0.0
    %1946 = vmatpush1.msra.mxu0 0.0
    %1947 = vmatprep.subr.mxu0 0.0
    %1948 = vmatpush1.msra.mxu0 0.0
    %1949 = vmatprep.subr.mxu0 0.0
    %1950 = vmatpush1.msra.mxu0 0.0
    %1951 = vmatprep.subr.mxu0 0.0
    %1952 = vmatpush1.msra.mxu0 0.0
    %1953 = vmatprep.subr.mxu0 0.0
    %1954 = vmatpush1.msra.mxu0 0.0
    %1955 = vmatprep.subr.mxu0 0.0
    %1956 = vmatpush1.msra.mxu0 0.0
    %1957 = vmatprep.subr.mxu0 0.0
    %1958 = vmatpush1.msra.mxu0 0.0
    %1959 = vmatprep.subr.mxu0 0.0
    %1960 = vmatpush1.msra.mxu0 0.0
    %1961 = vmatprep.subr.mxu0 0.0
    %1962 = vmatpush1.msra.mxu0 0.0
    %1963 = vmatprep.subr.mxu0 0.0
    %1964 = vmatpush1.msra.mxu0 0.0
    %1965 = vmatprep.subr.mxu0 0.0
    %1966 = vmatpush1.msra.mxu0 0.0
    %1967 = vmatprep.subr.mxu0 0.0
    %1968 = vmatpush1.msra.mxu0 0.0
    %1969 = vmatprep.subr.mxu0 0.0
    %1970 = vmatpush1.msra.mxu0 0.0
    %1971 = vmatprep.subr.mxu0 0.0
    %1972 = vmatpush1.msra.mxu0 0.0
    %1973 = vmatprep.subr.mxu0 0.0
    %1974 = vmatpush1.msra.mxu0 0.0
    %1975 = vmatprep.subr.mxu0 0.0
    %1976 = vmatpush1.msra.mxu0 0.0
    %1977 = vmatprep.subr.mxu0 0.0
    %1978 = vmatpush1.msra.mxu0 0.0
    %1979 = vmatprep.subr.mxu0 0.0
    %1980 = vmatpush1.msra.mxu0 0.0
    %1981 = vmatprep.subr.mxu0 0.0
    %1982 = vmatpush1.msra.mxu0 0.0
    %1983 = vmatprep.mubr.f32.mxu0 0.0
    %1984 = vmatmul.mubr.f32.gmra.mrb[0].mxu0 %v1914
    %v1985 = vpop.f32.mrb[0].mxu0
    %v1986 = vadd.f32 0.0, %v1985
    %v1987 = vpop.f32.mrb[0].mxu0
    %1988 = vmatprep.mubr.f32.mxu0 0.0
    %1989 = vmatmul.mubr.f32.gmra.mrb[0].mxu0 %v1917
    %v1990 = vpop.f32.mrb[0].mxu0
    %v1991 = vadd.f32 0.0, %v1990
    %v1992 = vpop.f32.mrb[0].mxu0
    %1993 = vdwg.mxu0
    %v1995 = vsel %vm985, %v1739, 0
    %v1998 = vsel %vm985, %v1744, 0
    %2000 = vmatprep.subr.mxu0 0.0
    %2001 = vmatpush1.msra.mxu0 %v1750
    %2002 = vmatprep.subr.mxu0 0.0
    %2003 = vmatpush1.msra.mxu0 0.0
    %2004 = vmatprep.subr.mxu0 0.0
    %2005 = vmatpush1.msra.mxu0 0.0
    %2006 = vmatprep.subr.mxu0 0.0
    %2007 = vmatpush1.msra.mxu0 0.0
    %2008 = vmatprep.subr.mxu0 0.0
    %2009 = vmatpush1.msra.mxu0 0.0
    %2010 = vmatprep.subr.mxu0 0.0
    %2011 = vmatpush1.msra.mxu0 0.0
    %2012 = vmatprep.subr.mxu0 0.0
    %2013 = vmatpush1.msra.mxu0 0.0
    %2014 = vmatprep.subr.mxu0 0.0
    %2015 = vmatpush1.msra.mxu0 0.0
    %2016 = vmatprep.subr.mxu0 0.0
    %2017 = vmatpush1.msra.mxu0 0.0
    %2018 = vmatprep.subr.mxu0 0.0
    %2019 = vmatpush1.msra.mxu0 0.0
    %2020 = vmatprep.subr.mxu0 0.0
    %2021 = vmatpush1.msra.mxu0 0.0
    %2022 = vmatprep.subr.mxu0 0.0
    %2023 = vmatpush1.msra.mxu0 0.0
    %2024 = vmatprep.subr.mxu0 0.0
    %2025 = vmatpush1.msra.mxu0 0.0
    %2026 = vmatprep.subr.mxu0 0.0
    %2027 = vmatpush1.msra.mxu0 0.0
    %2028 = vmatprep.subr.mxu0 0.0
    %2029 = vmatpush1.msra.mxu0 0.0
    %2030 = vmatprep.subr.mxu0 0.0
    %2031 = vmatpush1.msra.mxu0 0.0
    %2032 = vmatprep.subr.mxu0 0.0
    %2033 = vmatpush1.msra.mxu0 0.0
    %2034 = vmatprep.subr.mxu0 0.0
    %2035 = vmatpush1.msra.mxu0 0.0
    %2036 = vmatprep.subr.mxu0 0.0
    %2037 = vmatpush1.msra.mxu0 0.0
    %2038 = vmatprep.subr.mxu0 0.0
    %2039 = vmatpush1.msra.mxu0 0.0
    %2040 = vmatprep.subr.mxu0 0.0
    %2041 = vmatpush1.msra.mxu0 0.0
    %2042 = vmatprep.subr.mxu0 0.0
    %2043 = vmatpush1.msra.mxu0 0.0
    %2044 = vmatprep.subr.mxu0 0.0
    %2045 = vmatpush1.msra.mxu0 0.0
    %2046 = vmatprep.subr.mxu0 0.0
    %2047 = vmatpush1.msra.mxu0 0.0
    %2048 = vmatprep.subr.mxu0 0.0
    %2049 = vmatpush1.msra.mxu0 0.0
    %2050 = vmatprep.subr.mxu0 0.0
    %2051 = vmatpush1.msra.mxu0 0.0
    %2052 = vmatprep.subr.mxu0 0.0
    %2053 = vmatpush1.msra.mxu0 0.0
    %2054 = vmatprep.subr.mxu0 0.0
    %2055 = vmatpush1.msra.mxu0 0.0
    %2056 = vmatprep.subr.mxu0 0.0
    %2057 = vmatpush1.msra.mxu0 0.0
    %2058 = vmatprep.subr.mxu0 0.0
    %2059 = vmatpush1.msra.mxu0 0.0
    %2060 = vmatprep.subr.mxu0 0.0
    %2061 = vmatpush1.msra.mxu0 0.0
    %2062 = vmatprep.subr.mxu0 0.0
    %2063 = vmatpush1.msra.mxu0 0.0
    %2064 = vmatprep.mubr.f32.mxu0 0.0
    %2065 = vmatmul.mubr.f32.gmra.mrb[0].mxu0 %v1995
    %v2066 = vpop.f32.mrb[0].mxu0
    %v2067 = vadd.f32 0.0, %v2066
    %v2068 = vpop.f32.mrb[0].mxu0
    %2069 = vmatprep.mubr.f32.mxu0 0.0
    %2070 = vmatmul.mubr.f32.gmra.mrb[0].mxu0 %v1998
    %v2071 = vpop.f32.mrb[0].mxu0
    %v2072 = vadd.f32 0.0, %v2071
    %v2073 = vpop.f32.mrb[0].mxu0
    %2074 = vdwg.mxu0
    %v2075 = vsel %vm44, %v1824, 0.0
    %v2076 = vsel %vm44, %v1905, 0.0
    %v2077 = vadd.f32 %v2075, %v2076
    %v2078 = vsel %vm44, %v1986, 0.0
    %v2079 = vadd.f32 %v2077, %v2078
    %v2080 = vsel %vm44, %v2067, 0.0
    %v2081 = vadd.f32 %v2079, %v2080
    %v2082 = vsel %vm44, %v1829, 0.0
    %v2083 = vsel %vm44, %v1910, 0.0
    %v2084 = vadd.f32 %v2082, %v2083
    %v2085 = vsel %vm44, %v1991, 0.0
    %v2086 = vadd.f32 %v2084, %v2085
    %v2087 = vsel %vm44, %v2072, 0.0
    %v2088 = vadd.f32 %v2086, %v2087
    %v2089 = vadd.f32 %v18, %v2081
    %v2090 = vadd.f32 %v19, %v2088
    %2091 = vst.msk [vmem:[#allocation2] sm:$0xff] %vm44, %v2089
    %2092 = vst.msk [vmem:[#allocation2 + $0x8] sm:$0xff] %vm44, %v2090
    // Predicated region
    $region18: #{checkpoint_wrapper_forward.1} parent=1 // pred_check
      _
    $region19: #{checkpoint_wrapper_forward.1} parent=1 // pred_check_branch
      %2094 = sbr.rel (0) target = $region21
    $region20: #{checkpoint_wrapper_forward.1} parent=1 // pred_region
      %s2096 = ssub.s32 256, 256
      %2097 = vsyncadd [#allocation3], %s2096
      %s2098 = sshll.u32 [#allocation2], 4
      %s2099 = int_to_ptr.vmem [resolvable:$true] %s2098
      %2104 = dma.vmem_to_hbm [thread:$0]  %s2099, 256, %s4, [#allocation3], 128, 128, 8
    $region21: #{checkpoint_wrapper_forward.1} parent=1 // pred_fallthru
      _
    // Predicated region
    $region22: #{checkpoint_wrapper_forward.1} parent=1 // pred_check
      _
    $region23: #{checkpoint_wrapper_forward.1} parent=1 // pred_check_branch
      %2106 = sbr.rel (0) target = $region25
    $region24: #{checkpoint_wrapper_forward.1} parent=1 // pred_region
      %2107 = dma.done [#allocation3], 256
    $region25: #{checkpoint_wrapper_forward.1} parent=1 // pred_fallthru
      _
    %2108 = vsyncpa [#allocation3], 1

</llo_original>
